<compile_context>
chip_gen: v7x
topology: tpu7x:2x2x1
jax: 0.10.0
libtpu: 0.0.40
codegen_flags: <defaults>
</compile_context>

<pallas_src>
import functools

import jax
import jax.numpy as jnp
from jax.experimental import pallas as pl
from jax.experimental.pallas import tpu as pltpu


def _twocnn_kernel(x_ref, w_ref, b_ref, o_ref, patch_ref, *, H, W, B_blk):
    """Fused 3x3 same-conv + bias + residual for a block of B_blk images.

    x_ref     : (B_blk, C, H*W)   f32   planar activations (lane-dense)
    w_ref     : (C, 9*C)          bf16  im2col weight matrix, tap-major (kh, kw, ci)
    b_ref     : (C, 1)            f32   bias
    o_ref     : (B_blk, C, H*W)   f32   output
    patch_ref : (9*C, B_blk*H*W)  bf16  VMEM scratch: im2col patch matrix
    """
    C = x_ref.shape[1]
    HW = H * W

    # Column-validity masks (depend only on the pixel column; shared by all images):
    #   dx = +1 taps read the pixel to the right -> a source pixel in column 0 would
    #            wrap from the next row, so zero source column 0 before rolling.
    #   dx = -1 taps read the pixel to the left  -> zero source column W-1.
    px = jax.lax.broadcasted_iota(jnp.int32, (1, HW), 1) % W
    not_col_first = px != 0
    not_col_last = px != (W - 1)

    # Row-invalid spans (dy = -1: first W dest pixels; dy = +1: last W dest pixels)
    # are zeroed with narrow stores into the scratch instead of full-tile selects.
    zeros_rows3 = jnp.zeros((3 * C, W), patch_ref.dtype)

    for b in range(B_blk):
        x_img = x_ref[b]                                   # (C, HW) f32
        # TODO(synk): on v6e/v7x these two selects could run in bf16 (half the vregs);
        # kept in f32 so the identical kernel also lowers/behaves sanely on v5e.
        x_for_dxp = jnp.where(not_col_first, x_img, 0.0)   # source for dx = +1 taps
        x_for_dxm = jnp.where(not_col_last, x_img, 0.0)    # source for dx = -1 taps
        src_by_dx = {-1: x_for_dxm, 0: x_img, 1: x_for_dxp}

        base = b * HW
        t = 0
        for dy in (-1, 0, 1):
            for dx in (-1, 0, 1):
                src = src_by_dx[dx]
                s = dy * W + dx                            # flattened pixel shift
                tap = src if s == 0 else pltpu.roll(src, shift=(-s) % HW, axis=1)
                patch_ref[t * C:(t + 1) * C, base:base + HW] = tap.astype(patch_ref.dtype)
                t += 1

        # Zero the row-invalid halo spans (covers wraparound of the rolls as well).
        patch_ref[0:3 * C, base:base + W] = zeros_rows3                    # dy = -1 taps
        patch_ref[6 * C:9 * C, base + HW - W:base + HW] = zeros_rows3      # dy = +1 taps

        # One MXU matmul per image: (C, 9C) @ (9C, HW), K = 9*Cin, f32 accumulation.
        acc = jnp.dot(w_ref[...], patch_ref[:, base:base + HW],
                      preferred_element_type=jnp.float32)
        acc = acc + b_ref[...]                             # bias (broadcast over lanes)
        acc = acc + x_img                                  # TwoCNN residual: conv(x) + x
        o_ref[b] = acc.astype(o_ref.dtype)


def _pick_block_batch(N, C, HW, *, max_unroll=8, vmem_budget_bytes=20 << 20):
    """Images per grid step: amortize per-step overhead, fit VMEM, keep grid >= 2."""
    # per-image: bf16 im2col scratch + double-buffered f32 in/out activation tiles
    per_img = 9 * C * HW * 2 + 2 * 2 * C * HW * 4
    fit = max(1, vmem_budget_bytes // per_img)
    target = max(1, min(N, max_unroll, fit))
    if N >= 2:                                  # keep >= 2 grid steps for v7x's 2 TCs
        target = min(target, -(-N // 2))
    for b in range(target, 0, -1):              # largest divisor of N <= target
        if N % b == 0:
            return b
    return 1


def two_cnn(x, weight, bias):
    """TwoCNN forward: y = conv3x3_same(x; weight, bias) + x.

    x      : (N, C, H, W) f32   (PyTorch NCHW layout)
    weight : (C, C, 3, 3) f32   (already weight-norm reparametrized, OIHW)
    bias   : (C,)         f32
    """
    N, C, H, W = x.shape
    HW = H * W

    # Reshape only (NCHW is already contiguous as (N, C, HW)) -- no HBM transpose.
    x_flat = x.reshape(N, C, HW)

    # im2col weight matrix (Cout, 9*Cin), tap-major (kh, kw, ci); bf16 for the MXU.
    w_mat = jnp.transpose(weight, (0, 2, 3, 1)).reshape(C, 9 * C).astype(jnp.bfloat16)
    b_col = bias.reshape(C, 1).astype(jnp.float32)

    B_blk = _pick_block_batch(N, C, HW)
    grid = (N // B_blk,)

    per_img_vmem = 9 * C * HW * 2 + 2 * 2 * C * HW * 4
    vmem_need = B_blk * per_img_vmem + 2 * (w_mat.size * 2 + C * 4)
    vmem_limit = int(min(max(2 * vmem_need, 8 << 20), 48 << 20))   # <= v7x 64 MiB part

    flops = 2 * N * HW * C * (9 * C) + 2 * N * HW * C       # matmul + bias/residual adds
    bytes_accessed = 2 * x_flat.size * 4 + w_mat.size * 2 + b_col.size * 4

    out_flat = pl.pallas_call(
        functools.partial(_twocnn_kernel, H=H, W=W, B_blk=B_blk),
        out_shape=jax.ShapeDtypeStruct((N, C, HW), x.dtype),
        grid=grid,
        in_specs=[
            pl.BlockSpec((B_blk, C, HW), lambda n: (n, 0, 0)),   # this block's images
            pl.BlockSpec((C, 9 * C), lambda n: (0, 0)),          # weights (grid-invariant)
            pl.BlockSpec((C, 1), lambda n: (0, 0)),              # bias    (grid-invariant)
        ],
        out_specs=pl.BlockSpec((B_blk, C, HW), lambda n: (n, 0, 0)),
        scratch_shapes=[pltpu.VMEM((9 * C, B_blk * HW), jnp.bfloat16)],
        compiler_params=pltpu.CompilerParams(
            dimension_semantics=("parallel",),        # images independent (v7x: 2 TCs)
            vmem_limit_bytes=vmem_limit),
        cost_estimate=pl.CostEstimate(
            flops=flops, transcendentals=0, bytes_accessed=bytes_accessed),
    )(x_flat, w_mat, b_col)

    return out_flat.reshape(N, C, H, W)


if __name__ == "__main__":
    key = jax.random.PRNGKey(0)
    N, C, H, W = 2, 64, 16, 16        # TwoCNN default n_feats=64
    k_v, k_b, k_x = jax.random.split(key, 3)

    # weight_norm(Conv2d) parameters: w = g * v / ||v||; default init has g = ||v||.
    v = jax.random.normal(k_v, (C, C, 3, 3), jnp.float32) * 0.05
    norm = jnp.sqrt(jnp.sum(v * v, axis=(1, 2, 3), keepdims=True))
    g = norm
    weight = g * v / norm
    bias = jax.random.uniform(k_b, (C,), jnp.float32, -0.04, 0.04)

    x = jax.random.normal(k_x, (N, C, H, W), jnp.float32)

    out = jax.block_until_ready(two_cnn(x, weight, bias))
    assert out.shape == (N, C, H, W), out.shape

    # Reference: plain XLA conv + residual in f32 (kernel uses bf16 MXU inputs,
    # so allow a small tolerance).
    ref = jax.lax.conv_general_dilated(
        x, weight, window_strides=(1, 1), padding="SAME",
        dimension_numbers=("NCHW", "OIHW", "NCHW"))
    ref = ref + bias[None, :, None, None] + x
    max_err = float(jnp.max(jnp.abs(out - ref)))
    assert max_err < 1e-1, f"max abs err {max_err}"
    print("KERNEL_OK")
</pallas_src>

<mosaic_0001>
module attributes {stable_mosaic.version = 11 : i64} {
  func.func @_twocnn_kernel(%arg0: i32, %arg1: memref<1x64x256xf32, #tpu.memory_space<vmem>>, %arg2: memref<64x576xbf16, #tpu.memory_space<vmem>>, %arg3: memref<64x1xf32, #tpu.memory_space<vmem>>, %arg4: memref<1x64x256xf32, #tpu.memory_space<vmem>>, %arg5: memref<576x256xbf16, #tpu.memory_space<vmem>>) attributes {dimension_semantics = [#tpu.dimension_semantics<parallel>], iteration_bounds = array<i64: 2>, scalar_prefetch = 0 : i64, scratch_operands = 1 : i64, tpu.core_type = #tpu.core_type<tc>, window_params = [{transform_indices = @transform_0, window_bounds = array<i64: 1, 64, 256>}, {pipeline_mode = #tpu.pipeline_mode<synchronous>, transform_indices = @transform_1, window_bounds = array<i64: 64, 576>}, {pipeline_mode = #tpu.pipeline_mode<synchronous>, transform_indices = @transform_2, window_bounds = array<i64: 64, 1>}, {transform_indices = @transform_3, window_bounds = array<i64: 1, 64, 256>}]} {
    %0 = tpu.iota {dimensions = array<i32: 1>} : vector<1x256xi32>
    %c16_i32 = arith.constant 16 : i32
    %c0_i32 = arith.constant 0 : i32
    %1 = arith.cmpi eq, %c16_i32, %c0_i32 : i32
    %c1_i32 = arith.constant 1 : i32
    %2 = arith.select %1, %c1_i32, %c16_i32 : i32
    %3 = vector.broadcast %2 : i32 to vector<1x256xi32>
    %4 = arith.remsi %0, %3 : vector<1x256xi32>
    %c0_i32_0 = arith.constant 0 : i32
    %5 = vector.broadcast %c0_i32_0 : i32 to vector<1x256xi32>
    %6 = arith.cmpi ne, %4, %5 : vector<1x256xi32>
    %c0_i32_1 = arith.constant 0 : i32
    %7 = vector.broadcast %c0_i32_1 : i32 to vector<1x256xi32>
    %8 = arith.cmpi slt, %4, %7 : vector<1x256xi32>
    %c0_i32_2 = arith.constant 0 : i32
    %9 = arith.cmpi slt, %2, %c0_i32_2 : i32
    %10 = vector.broadcast %9 : i1 to vector<1x256xi1>
    %11 = vector.broadcast %10 : vector<1x256xi1> to vector<1x256xi1>
    %12 = arith.xori %8, %11 : vector<1x256xi1>
    %13 = arith.andi %12, %6 : vector<1x256xi1>
    %14 = vector.broadcast %2 : i32 to vector<1x256xi32>
    %15 = arith.addi %4, %14 : vector<1x256xi32>
    %16 = arith.select %13, %15, %4 : vector<1x256xi1>, vector<1x256xi32>
    %c0_i32_3 = arith.constant 0 : i32
    %17 = vector.broadcast %c0_i32_3 : i32 to vector<1x256xi32>
    %18 = arith.cmpi ne, %16, %17 : vector<1x256xi32>
    %c15_i32 = arith.constant 15 : i32
    %19 = vector.broadcast %c15_i32 : i32 to vector<1x256xi32>
    %20 = arith.cmpi ne, %16, %19 : vector<1x256xi32>
    %cst = arith.constant 0.000000e+00 : bf16
    %21 = vector.broadcast %cst : bf16 to vector<192x16xbf16>
    %c0 = arith.constant 0 : index
    %c0_4 = arith.constant 0 : index
    %c0_5 = arith.constant 0 : index
    %22 = vector.load %arg1[%c0, %c0_4, %c0_5] : memref<1x64x256xf32, #tpu.memory_space<vmem>>, vector<1x64x256xf32>
    %23 = vector.shape_cast %22 : vector<1x64x256xf32> to vector<64x256xf32>
    %cst_6 = arith.constant 0.000000e+00 : f32
    %24 = vector.shape_cast %18 : vector<1x256xi1> to vector<1x256xi1>
    %25 = vector.broadcast %24 : vector<1x256xi1> to vector<64x256xi1>
    %26 = vector.broadcast %cst_6 : f32 to vector<64x256xf32>
    %27 = arith.select %25, %23, %26 : vector<64x256xi1>, vector<64x256xf32>
    %cst_7 = arith.constant 0.000000e+00 : f32
    %28 = vector.shape_cast %20 : vector<1x256xi1> to vector<1x256xi1>
    %29 = vector.broadcast %28 : vector<1x256xi1> to vector<64x256xi1>
    %30 = vector.broadcast %cst_7 : f32 to vector<64x256xf32>
    %31 = arith.select %29, %23, %30 : vector<64x256xi1>, vector<64x256xf32>
    %c17_i32 = arith.constant 17 : i32
    %32 = tpu.dynamic_rotate %31 by %c17_i32 dim 1 : vector<64x256xf32>, i32 -> vector<64x256xf32>
    %33 = arith.truncf %32 : vector<64x256xf32> to vector<64x256xbf16>
    %c0_8 = arith.constant 0 : index
    %c0_9 = arith.constant 0 : index
    %34 = vector.load %arg5[%c0_8, %c0_9] : memref<576x256xbf16, #tpu.memory_space<vmem>>, vector<64x256xbf16>
    tpu.vector_store %arg5[%c0_8, %c0_9], %33 {strides = array<i32>} : memref<576x256xbf16, #tpu.memory_space<vmem>>, vector<64x256xbf16>,
    %c16_i32_10 = arith.constant 16 : i32
    %35 = tpu.dynamic_rotate %23 by %c16_i32_10 dim 1 : vector<64x256xf32>, i32 -> vector<64x256xf32>
    %36 = arith.truncf %35 : vector<64x256xf32> to vector<64x256xbf16>
    %c64 = arith.constant 64 : index
    %c0_11 = arith.constant 0 : index
    %37 = vector.load %arg5[%c64, %c0_11] : memref<576x256xbf16, #tpu.memory_space<vmem>>, vector<64x256xbf16>
    tpu.vector_store %arg5[%c64, %c0_11], %36 {strides = array<i32>} : memref<576x256xbf16, #tpu.memory_space<vmem>>, vector<64x256xbf16>,
    %c15_i32_12 = arith.constant 15 : i32
    %38 = tpu.dynamic_rotate %27 by %c15_i32_12 dim 1 : vector<64x256xf32>, i32 -> vector<64x256xf32>
    %39 = arith.truncf %38 : vector<64x256xf32> to vector<64x256xbf16>
    %c128 = arith.constant 128 : index
    %c0_13 = arith.constant 0 : index
    %40 = vector.load %arg5[%c128, %c0_13] : memref<576x256xbf16, #tpu.memory_space<vmem>>, vector<64x256xbf16>
    tpu.vector_store %arg5[%c128, %c0_13], %39 {strides = array<i32>} : memref<576x256xbf16, #tpu.memory_space<vmem>>, vector<64x256xbf16>,
    %c1_i32_14 = arith.constant 1 : i32
    %41 = tpu.dynamic_rotate %31 by %c1_i32_14 dim 1 : vector<64x256xf32>, i32 -> vector<64x256xf32>
    %42 = arith.truncf %41 : vector<64x256xf32> to vector<64x256xbf16>
    %c192 = arith.constant 192 : index
    %c0_15 = arith.constant 0 : index
    %43 = vector.load %arg5[%c192, %c0_15] : memref<576x256xbf16, #tpu.memory_space<vmem>>, vector<64x256xbf16>
    tpu.vector_store %arg5[%c192, %c0_15], %42 {strides = array<i32>} : memref<576x256xbf16, #tpu.memory_space<vmem>>, vector<64x256xbf16>,
    %44 = arith.truncf %23 : vector<64x256xf32> to vector<64x256xbf16>
    %c256 = arith.constant 256 : index
    %c0_16 = arith.constant 0 : index
    %45 = vector.load %arg5[%c256, %c0_16] : memref<576x256xbf16, #tpu.memory_space<vmem>>, vector<64x256xbf16>
    tpu.vector_store %arg5[%c256, %c0_16], %44 {strides = array<i32>} : memref<576x256xbf16, #tpu.memory_space<vmem>>, vector<64x256xbf16>,
    %c255_i32 = arith.constant 255 : i32
    %46 = tpu.dynamic_rotate %27 by %c255_i32 dim 1 : vector<64x256xf32>, i32 -> vector<64x256xf32>
    %47 = arith.truncf %46 : vector<64x256xf32> to vector<64x256xbf16>
    %c320 = arith.constant 320 : index
    %c0_17 = arith.constant 0 : index
    %48 = vector.load %arg5[%c320, %c0_17] : memref<576x256xbf16, #tpu.memory_space<vmem>>, vector<64x256xbf16>
    tpu.vector_store %arg5[%c320, %c0_17], %47 {strides = array<i32>} : memref<576x256xbf16, #tpu.memory_space<vmem>>, vector<64x256xbf16>,
    %c241_i32 = arith.constant 241 : i32
    %49 = tpu.dynamic_rotate %31 by %c241_i32 dim 1 : vector<64x256xf32>, i32 -> vector<64x256xf32>
    %50 = arith.truncf %49 : vector<64x256xf32> to vector<64x256xbf16>
    %c384 = arith.constant 384 : index
    %c0_18 = arith.constant 0 : index
    %51 = vector.load %arg5[%c384, %c0_18] : memref<576x256xbf16, #tpu.memory_space<vmem>>, vector<64x256xbf16>
    tpu.vector_store %arg5[%c384, %c0_18], %50 {strides = array<i32>} : memref<576x256xbf16, #tpu.memory_space<vmem>>, vector<64x256xbf16>,
    %c240_i32 = arith.constant 240 : i32
    %52 = tpu.dynamic_rotate %23 by %c240_i32 dim 1 : vector<64x256xf32>, i32 -> vector<64x256xf32>
    %53 = arith.truncf %52 : vector<64x256xf32> to vector<64x256xbf16>
    %c448 = arith.constant 448 : index
    %c0_19 = arith.constant 0 : index
    %54 = vector.load %arg5[%c448, %c0_19] : memref<576x256xbf16, #tpu.memory_space<vmem>>, vector<64x256xbf16>
    tpu.vector_store %arg5[%c448, %c0_19], %53 {strides = array<i32>} : memref<576x256xbf16, #tpu.memory_space<vmem>>, vector<64x256xbf16>,
    %c239_i32 = arith.constant 239 : i32
    %55 = tpu.dynamic_rotate %27 by %c239_i32 dim 1 : vector<64x256xf32>, i32 -> vector<64x256xf32>
    %56 = arith.truncf %55 : vector<64x256xf32> to vector<64x256xbf16>
    %c512 = arith.constant 512 : index
    %c0_20 = arith.constant 0 : index
    %57 = vector.load %arg5[%c512, %c0_20] : memref<576x256xbf16, #tpu.memory_space<vmem>>, vector<64x256xbf16>
    tpu.vector_store %arg5[%c512, %c0_20], %56 {strides = array<i32>} : memref<576x256xbf16, #tpu.memory_space<vmem>>, vector<64x256xbf16>,
    %c0_21 = arith.constant 0 : index
    %c0_22 = arith.constant 0 : index
    %58 = vector.load %arg5[%c0_21, %c0_22] : memref<576x256xbf16, #tpu.memory_space<vmem>>, vector<192x16xbf16>
    tpu.vector_store %arg5[%c0_21, %c0_22], %21 {strides = array<i32>} : memref<576x256xbf16, #tpu.memory_space<vmem>>, vector<192x16xbf16>,
    %c384_23 = arith.constant 384 : index
    %c240 = arith.constant 240 : index
    %59 = vector.load %arg5[%c384_23, %c240] : memref<576x256xbf16, #tpu.memory_space<vmem>>, vector<192x16xbf16>
    tpu.vector_store %arg5[%c384_23, %c240], %21 {strides = array<i32>} : memref<576x256xbf16, #tpu.memory_space<vmem>>, vector<192x16xbf16>,
    %c0_24 = arith.constant 0 : index
    %c0_25 = arith.constant 0 : index
    %60 = vector.load %arg2[%c0_24, %c0_25] : memref<64x576xbf16, #tpu.memory_space<vmem>>, vector<64x576xbf16>
    %c0_26 = arith.constant 0 : index
    %c0_27 = arith.constant 0 : index
    %61 = vector.load %arg5[%c0_26, %c0_27] : memref<576x256xbf16, #tpu.memory_space<vmem>>, vector<576x256xbf16>
    %cst_28 = arith.constant dense<0.000000e+00> : vector<64x256xf32>
    %62 = tpu.matmul %60, %61, %cst_28 {dimension_numbers = #tpu.dot_dimension_numbers<[1], [0], [0], [1], [0, 0, 1, 1], [], []>} : vector<64x576xbf16>, vector<576x256xbf16>, vector<64x256xf32> -> vector<64x256xf32>
    %c0_29 = arith.constant 0 : index
    %c0_30 = arith.constant 0 : index
    %63 = vector.load %arg3[%c0_29, %c0_30] : memref<64x1xf32, #tpu.memory_space<vmem>>, vector<64x1xf32>
    %64 = vector.broadcast %63 : vector<64x1xf32> to vector<64x256xf32>
    %65 = arith.addf %62, %64 : vector<64x256xf32>
    %66 = arith.addf %65, %23 : vector<64x256xf32>
    %c0_31 = arith.constant 0 : index
    %c0_32 = arith.constant 0 : index
    %c0_33 = arith.constant 0 : index
    %67 = vector.load %arg4[%c0_31, %c0_32, %c0_33] : memref<1x64x256xf32, #tpu.memory_space<vmem>>, vector<1x64x256xf32>
    %68 = vector.shape_cast %67 : vector<1x64x256xf32> to vector<64x256xf32>
    %69 = vector.shape_cast %66 : vector<64x256xf32> to vector<1x64x256xf32>
    tpu.vector_store %arg4[%c0_31, %c0_32, %c0_33], %69 {strides = array<i32>} : memref<1x64x256xf32, #tpu.memory_space<vmem>>, vector<1x64x256xf32>,
    return
  }
  func.func @transform_0(%arg0: i32) -> (i32, i32, i32) {
    %c0_i32 = arith.constant 0 : i32
    %c0_i32_0 = arith.constant 0 : i32
    %c0_i32_1 = arith.constant 0 : i32
    return %arg0, %c0_i32, %c0_i32_0 : i32, i32, i32
  }
  func.func @transform_1(%arg0: i32) -> (i32, i32) {
    %c0_i32 = arith.constant 0 : i32
    %c0_i32_0 = arith.constant 0 : i32
    %c0_i32_1 = arith.constant 0 : i32
    return %c0_i32, %c0_i32_0 : i32, i32
  }
  func.func @transform_2(%arg0: i32) -> (i32, i32) {
    %c0_i32 = arith.constant 0 : i32
    %c0_i32_0 = arith.constant 0 : i32
    %c0_i32_1 = arith.constant 0 : i32
    return %c0_i32, %c0_i32_0 : i32, i32
  }
  func.func @transform_3(%arg0: i32) -> (i32, i32, i32) {
    %c0_i32 = arith.constant 0 : i32
    %c0_i32_0 = arith.constant 0 : i32
    %c0_i32_1 = arith.constant 0 : i32
    return %arg0, %c0_i32, %c0_i32_0 : i32, i32, i32
  }
}

</mosaic_0001>

<llo_original>
// kernel: tpu_custom_call.1
$region0: #{tpu_custom_call.1}
  #allocation0 [shape = 'u32[]', space=smem, size = 0x4, offset = 0x4, fixed_abs, tag = 'smem constant byte address 0x4 - core index']
  #allocation1 [shape = 'u32[144,128]{1,0:T(1,128)}', space=vmem, size = 0x12000, scoped, tag = 'internal scratch']
  #allocation2 [shape = 'bf16[576,256]{1,0:T(16,128)(2,1)}', space=vmem, size = 0x48000, scoped, tag = 'scratch operand']
  %s0 = inlined_call_operand.hbm [shape: f32[2,64,256], index: 0, kind: input, shape index: {}]
  %s1 = inlined_call_operand.hbm [shape: bf16[64,576], index: 1, kind: input, shape index: {}]
  %s2 = inlined_call_operand.vmem [shape: f32[64,1], index: 2, kind: input, shape index: {}]
  %s3 = inlined_call_operand.hbm [shape: f32[2,64,256], index: 3, kind: output, shape index: {}]
  %s4 = sld [smem:[#allocation0]]
  $region53: #{tpu_custom_call.1} parent=0
    _
  %s6 = ssub.s32 1, %s4
  %s7 = scalar_select 0, %s6, %s4
  $region1: #{tpu_custom_call.1} parent=0
    #allocation3 [shape = 'u8[131072]{0}', space=vmem, size = 0x20000, scoped, tag = 'input window, operand 0']
    #allocation4 [shape = 's32[2]{0}', space=sflag, size = 0x8, scoped, tag = 'scoped memory for tpu_custom_call.1']
    #allocation5 [shape = 's32[2]{0}', space=sflag, size = 0x8, scoped, tag = 'scoped memory for tpu_custom_call.1']
    #allocation6 [shape = 'u8[81920]{0}', space=vmem, size = 0x14000, scoped, tag = 'input window, operand 1, single buffered']
    #allocation7 [shape = 's32[1]{0}', space=sflag, size = 0x4, scoped, tag = 'scoped memory for tpu_custom_call.1']
    #allocation8 [shape = 'u8[131072]{0}', space=vmem, size = 0x20000, scoped, tag = 'output window, operand 0']
    %8 = vsyncpa [#allocation4], 0
    %s9 = scalar_lea.sflag [#allocation4], 1
    %10 = vsyncpa %s9, 0
    %11 = vsyncpa [#allocation7], 0
    %12 = vsyncpa [#allocation5], 0
    %s13 = scalar_lea.sflag [#allocation5], 1
    %14 = vsyncpa %s13, 0
    loop: start=0, step=1, limit=4
    $region2: #{tpu_custom_call.1} parent=1 // loop_pre_header
      _
    $region3: #{tpu_custom_call.1} parent=1 // loop_header
      %s16 = sphi 0, %s20
      %p17 = scmp.ge.s32.totalorder %s16, 4
      %s26 = sphi 0, %s28
      %s29 = sphi 0, %s26
      %s30 = sphi 0, %s29
      %s46 = sphi 0, %s30
      %s50 = sphi 0, %s50
      %s52 = sphi 0, %s50
      %s53 = sphi 0, %s52
      %s67 = sphi 0, %s53
      %s71 = sphi 0, %s71
      %s73 = sphi 0, %s71
      %s74 = sphi 0, %s73
      %s88 = sphi 0, %s74
      %s94 = sphi 0, %s96
      %s97 = sphi 0, %s94
      %s98 = sphi 0, %s97
      %s114 = sphi 0, %s98
    $region4: #{tpu_custom_call.1} parent=1 // loop_header_branch
      %19 = sbr.rel (%p17) target = $region8
    $region5: #{tpu_custom_call.1} parent=1 // loop_body
      %s21 = ssub.s32 %s16, 1
      %s22 = ssub.s32 %s16, 2
      %s23 = sadd.s32 %s16, 1
      %s24 = ssub.s32 %s16, %s23
      %p25 = scmp.eq.s32.totalorder %s24, 0
      %s27 = sadd.s32 %s26, 1
      %s28 = scalar_select %p25, %s26, %s27
      %p31 = pneg %p25
      %p32 = scmp.eq.s32.totalorder %s16, 1
      %p33 = por %p31, %p32
      %p34 = scmp.ne.s32.totalorder %s26, %s29
      %p35 = scmp.eq.s32.totalorder %s16, 0
      %p36 = por %p34, %p35
      %p37 = scmp.ne.s32.totalorder %s26, %s29
      %p38 = scmp.eq.s32.totalorder %s21, 1
      %p39 = por %p37, %p38
      %p40 = scmp.ne.s32.totalorder %s29, %s30
      %p41 = scmp.eq.s32.totalorder %s21, 0
      %p42 = por %p40, %p41
      %p43 = scmp.ne.s32.totalorder %s29, %s30
      %p44 = scmp.eq.s32.totalorder %s22, 1
      %p45 = por %p43, %p44
      %p47 = scmp.ne.s32.totalorder %s30, %s46
      %p48 = scmp.eq.s32.totalorder %s22, 0
      %p49 = por %p47, %p48
      %s51 = sadd.s32 %s50, 1
      %p54 = scmp.eq.s32.totalorder %s16, 1
      %p55 = scmp.ne.s32.totalorder %s50, %s52
      %p56 = scmp.eq.s32.totalorder %s16, 0
      %p57 = por %p55, %p56
      %p58 = scmp.ne.s32.totalorder %s50, %s52
      %p59 = scmp.eq.s32.totalorder %s21, 1
      %p60 = por %p58, %p59
      %p61 = scmp.ne.s32.totalorder %s52, %s53
      %p62 = scmp.eq.s32.totalorder %s21, 0
      %p63 = por %p61, %p62
      %p64 = scmp.ne.s32.totalorder %s52, %s53
      %p65 = scmp.eq.s32.totalorder %s22, 1
      %p66 = por %p64, %p65
      %p68 = scmp.ne.s32.totalorder %s53, %s67
      %p69 = scmp.eq.s32.totalorder %s22, 0
      %p70 = por %p68, %p69
      %s72 = sadd.s32 %s71, 1
      %p75 = scmp.eq.s32.totalorder %s16, 1
      %p76 = scmp.ne.s32.totalorder %s71, %s73
      %p77 = scmp.eq.s32.totalorder %s16, 0
      %p78 = por %p76, %p77
      %p79 = scmp.ne.s32.totalorder %s71, %s73
      %p80 = scmp.eq.s32.totalorder %s21, 1
      %p81 = por %p79, %p80
      %p82 = scmp.ne.s32.totalorder %s73, %s74
      %p83 = scmp.eq.s32.totalorder %s21, 0
      %p84 = por %p82, %p83
      %p85 = scmp.ne.s32.totalorder %s73, %s74
      %p86 = scmp.eq.s32.totalorder %s22, 1
      %p87 = por %p85, %p86
      %p89 = scmp.ne.s32.totalorder %s74, %s88
      %p90 = scmp.eq.s32.totalorder %s22, 0
      %p91 = por %p89, %p90
      %s92 = ssub.s32 %s16, %s23
      %p93 = scmp.eq.s32.totalorder %s92, 0
      %s95 = sadd.s32 %s94, 1
      %s96 = scalar_select %p93, %s94, %s95
      %p99 = pneg %p93
      %p100 = scmp.eq.s32.totalorder %s16, 1
      %p101 = por %p99, %p100
      %p102 = scmp.ne.s32.totalorder %s94, %s97
      %p103 = scmp.eq.s32.totalorder %s16, 0
      %p104 = por %p102, %p103
      %p105 = scmp.ne.s32.totalorder %s94, %s97
      %p106 = scmp.eq.s32.totalorder %s21, 1
      %p107 = por %p105, %p106
      %p108 = scmp.ne.s32.totalorder %s97, %s98
      %p109 = scmp.eq.s32.totalorder %s21, 0
      %p110 = por %p108, %p109
      %p111 = scmp.ne.s32.totalorder %s97, %s98
      %p112 = scmp.eq.s32.totalorder %s22, 1
      %p113 = por %p111, %p112
      %p115 = scmp.ne.s32.totalorder %s98, %s114
      %p116 = scmp.eq.s32.totalorder %s22, 0
      %p117 = por %p115, %p116
      %p118 = scmp.le.s32.totalorder 1, %s16
      %p119 = scmp.lt.s32.totalorder %s16, 3
      %p120 = pnand %p118, %p119
      %p121 = pneg %p120
      // Predicated region
      $region9: #{tpu_custom_call.1} parent=5 // pred_check
        _
      $region10: #{tpu_custom_call.1} parent=5 // pred_check_branch
        %123 = sbr.rel (%p120) target = $region12
      $region11: #{tpu_custom_call.1} parent=5 // pred_region
        %s124 = ssub.s32 %s16, 1
        // Predicated region
        $region13: #{tpu_custom_call.1} parent=11 // pred_check
          %p125 = pneg %p63
        $region14: #{tpu_custom_call.1} parent=11 // pred_check_branch
          %127 = sbr.rel (%p125) target = $region16
        $region15: #{tpu_custom_call.1} parent=11 // pred_region
          %s129 = ssub.s32 2560, 2560
          %130 = vsyncadd [#allocation7], %s129
          %s131 = sshll.u32 [#allocation6], 4
          %s132 = int_to_ptr.vmem [resolvable:$true] %s131
          %137 = dma.hbm_to_vmem [thread:$0]  %s1, 2560, %s132, [#allocation7], 320, 320, 20
        $region16: #{tpu_custom_call.1} parent=11 // pred_fallthru
          _
        // Predicated region
        $region17: #{tpu_custom_call.1} parent=11 // pred_check
          %p138 = pneg %p84
        $region18: #{tpu_custom_call.1} parent=11 // pred_check_branch
          %140 = sbr.rel (%p138) target = $region20
        $region19: #{tpu_custom_call.1} parent=11 // pred_region
          _
        $region20: #{tpu_custom_call.1} parent=11 // pred_fallthru
          _
      $region12: #{tpu_custom_call.1} parent=5 // pred_fallthru
        _
      %p141 = scmp.lt.s32.totalorder %s16, 2
      // Predicated region
      $region21: #{tpu_custom_call.1} parent=5 // pred_check
        %p142 = pneg %p141
      $region22: #{tpu_custom_call.1} parent=5 // pred_check_branch
        %144 = sbr.rel (%p142) target = $region24
      $region23: #{tpu_custom_call.1} parent=5 // pred_region
        // Predicated region
        $region25: #{tpu_custom_call.1} parent=23 // pred_check
          %p145 = pneg %p36
        $region26: #{tpu_custom_call.1} parent=23 // pred_check_branch
          %147 = sbr.rel (%p145) target = $region28
        $region27: #{tpu_custom_call.1} parent=23 // pred_region
          %s148 = sand.u32 %s26, 1
          %s149 = scalar_lea.sflag [#allocation4], %s148
          %s150 = sand.u32 %s26, 1
          %s151 = smul.addr %s150, 128
          %s152 = scalar_lea.vmem [#allocation3], %s151
          %s154 = ssub.s32 2048, 2048
          %155 = vsyncadd %s149, %s154
          %s156 = smul.addr %s16, 16
          %s157 = smul.addr %s156, 128
          %s158 = scalar_lea.hbm %s0, %s157
          %s159 = sshll.u32 %s152, 4
          %s160 = int_to_ptr.vmem [resolvable:$true] %s159
          %165 = dma.hbm_to_vmem [thread:$0]  %s158, 2048, %s160, %s149, 256, 256, 16
        $region28: #{tpu_custom_call.1} parent=23 // pred_fallthru
          _
      $region24: #{tpu_custom_call.1} parent=5 // pred_fallthru
        _
      %p166 = scmp.le.s32.totalorder 1, %s16
      %p167 = scmp.lt.s32.totalorder %s16, 3
      %p168 = pnand %p166, %p167
      %p169 = pneg %p168
      // Predicated region
      $region29: #{tpu_custom_call.1} parent=5 // pred_check
        _
      $region30: #{tpu_custom_call.1} parent=5 // pred_check_branch
        %171 = sbr.rel (%p168) target = $region32
      $region31: #{tpu_custom_call.1} parent=5 // pred_region
        %s172 = ssub.s32 %s16, 1
        %s173 = sand.u32 %s29, 1
        %s174 = scalar_lea.sflag [#allocation4], %s173
        %s175 = sand.u32 %s29, 1
        %s176 = smul.addr %s175, 128
        %s177 = scalar_lea.vmem [#allocation3], %s176
        // Predicated region
        $region33: #{tpu_custom_call.1} parent=31 // pred_check
          %p178 = pneg %p42
        $region34: #{tpu_custom_call.1} parent=31 // pred_check_branch
          %180 = sbr.rel (%p178) target = $region36
        $region35: #{tpu_custom_call.1} parent=31 // pred_region
          %181 = dma.done %s174, 2048
        $region36: #{tpu_custom_call.1} parent=31 // pred_fallthru
          _
        // Predicated region
        $region37: #{tpu_custom_call.1} parent=31 // pred_check
          %p182 = pneg %p63
        $region38: #{tpu_custom_call.1} parent=31 // pred_check_branch
          %184 = sbr.rel (%p182) target = $region40
        $region39: #{tpu_custom_call.1} parent=31 // pred_region
          %185 = dma.done [#allocation7], 2560
        $region40: #{tpu_custom_call.1} parent=31 // pred_fallthru
          _
        %s186 = sand.u32 %s29, 1
        %s187 = scalar_lea.sflag [#allocation4], %s186
        %s188 = sand.u32 %s29, 1
        %s189 = smul.addr %s188, 128
        %s190 = scalar_lea.vmem [#allocation3], %s189
        %p191 = pneg %p42
        %p192 = pneg %p39
        %p193 = pneg %p63
        %p194 = pneg %p60
        %p195 = pneg %p84
        %p196 = pneg %p81
        %p197 = pneg %p110
        %p198 = pneg %p107
        %s199 = sand.u32 %s97, 1
        %s200 = scalar_lea.sflag [#allocation5], %s199
        %s201 = sand.u32 %s97, 1
        %s202 = smul.addr %s201, 128
        %s203 = scalar_lea.vmem [#allocation8], %s202
        %v205 = vlaneseq
        %v206 = vand.u32 %v205, 127
        %v207 = vadd.s32 %v206, 128
        %vm208 = vcmp.lt.s32.totalorder %v206, 0
        %v209 = vsub.s32 0, %v206
        %v210 = vsel %vm208, %v209, %v206
        %v211 = vshrl.u32 %v210, 4
        %v212 = vand.u32 %v210, 15
        %v213 = vsub.s32 0, %v212
        %v214 = vsel %vm208, %v213, %v212
        %vm215 = vcmp.lt.s32.totalorder %v207, 0
        %v216 = vsub.s32 0, %v207
        %v217 = vsel %vm215, %v216, %v207
        %v218 = vshrl.u32 %v217, 4
        %v219 = vand.u32 %v217, 15
        %v220 = vsub.s32 0, %v219
        %v221 = vsel %vm215, %v220, %v219
        %vm222 = vcmp.ne.s32.totalorder %v214, 0
        %vm223 = vcmp.ne.s32.totalorder %v221, 0
        %vm224 = vcmp.lt.s32.totalorder %v214, 0
        %vm225 = vcmp.lt.s32.totalorder %v221, 0
        %vm226 = vmand %vm224, %vm222
        %vm227 = vmand %vm225, %vm223
        %v228 = vadd.s32 %v214, 16
        %v229 = vadd.s32 %v221, 16
        %v230 = vsel %vm226, %v228, %v214
        %v231 = vsel %vm227, %v229, %v221
        %vm232 = vcmp.ne.s32.totalorder %v230, 0
        %vm233 = vcmp.ne.s32.totalorder %v231, 0
        %vm234 = vcmp.ne.s32.totalorder %v230, 15
        %vm235 = vcmp.ne.s32.totalorder %v231, 15
        %v236 = vld [vmem:[%s177] sm:$0xff]
        %v237 = vld [vmem:[%s177 + $0x8] sm:$0xff]
        %v238 = vld [vmem:[%s177 + $0x10] sm:$0xff]
        %v239 = vld [vmem:[%s177 + $0x18] sm:$0xff]
        %v240 = vld [vmem:[%s177 + $0x20] sm:$0xff]
        %v241 = vld [vmem:[%s177 + $0x28] sm:$0xff]
        %v242 = vld [vmem:[%s177 + $0x30] sm:$0xff]
        %v243 = vld [vmem:[%s177 + $0x38] sm:$0xff]
        %v244 = vld [vmem:[%s177 + $0x40] sm:$0xff]
        %v245 = vld [vmem:[%s177 + $0x48] sm:$0xff]
        %v246 = vld [vmem:[%s177 + $0x50] sm:$0xff]
        %v247 = vld [vmem:[%s177 + $0x58] sm:$0xff]
        %v248 = vld [vmem:[%s177 + $0x60] sm:$0xff]
        %v249 = vld [vmem:[%s177 + $0x68] sm:$0xff]
        %v250 = vld [vmem:[%s177 + $0x70] sm:$0xff]
        %v251 = vld [vmem:[%s177 + $0x78] sm:$0xff]
        %v252 = vsel %vm232, 1, 0
        %v253 = vsel %vm233, 1, 0
        %vm254 = vcmp.eq.s32.totalorder %v252, 1
        %vm255 = vcmp.eq.s32.totalorder %v253, 1
        %v256 = vsel %vm254, %v236, 0.0
        %v257 = vsel %vm255, %v237, 0.0
        %v258 = vsel %vm254, %v238, 0.0
        %v259 = vsel %vm255, %v239, 0.0
        %v260 = vsel %vm254, %v240, 0.0
        %v261 = vsel %vm255, %v241, 0.0
        %v262 = vsel %vm254, %v242, 0.0
        %v263 = vsel %vm255, %v243, 0.0
        %v264 = vsel %vm254, %v244, 0.0
        %v265 = vsel %vm255, %v245, 0.0
        %v266 = vsel %vm254, %v246, 0.0
        %v267 = vsel %vm255, %v247, 0.0
        %v268 = vsel %vm254, %v248, 0.0
        %v269 = vsel %vm255, %v249, 0.0
        %v270 = vsel %vm254, %v250, 0.0
        %v271 = vsel %vm255, %v251, 0.0
        %v272 = vsel %vm234, 1, 0
        %v273 = vsel %vm235, 1, 0
        %vm274 = vcmp.eq.s32.totalorder %v272, 1
        %vm275 = vcmp.eq.s32.totalorder %v273, 1
        %v276 = vsel %vm274, %v236, 0.0
        %v277 = vsel %vm275, %v237, 0.0
        %v278 = vsel %vm274, %v238, 0.0
        %v279 = vsel %vm275, %v239, 0.0
        %v280 = vsel %vm274, %v240, 0.0
        %v281 = vsel %vm275, %v241, 0.0
        %v282 = vsel %vm274, %v242, 0.0
        %v283 = vsel %vm275, %v243, 0.0
        %v284 = vsel %vm274, %v244, 0.0
        %v285 = vsel %vm275, %v245, 0.0
        %v286 = vsel %vm274, %v246, 0.0
        %v287 = vsel %vm275, %v247, 0.0
        %v288 = vsel %vm274, %v248, 0.0
        %v289 = vsel %vm275, %v249, 0.0
        %v290 = vsel %vm274, %v250, 0.0
        %v291 = vsel %vm275, %v251, 0.0
        %292 = vrot.lane.b32.xlu0 %v276, 17
        %v293 = vpop.permute.xlu0 %292
        %294 = vrot.lane.b32.xlu0 %v278, 17
        %v295 = vpop.permute.xlu0 %294
        %296 = vrot.lane.b32.xlu0 %v280, 17
        %v297 = vpop.permute.xlu0 %296
        %298 = vrot.lane.b32.xlu0 %v282, 17
        %v299 = vpop.permute.xlu0 %298
        %300 = vrot.lane.b32.xlu0 %v284, 17
        %v301 = vpop.permute.xlu0 %300
        %302 = vrot.lane.b32.xlu0 %v286, 17
        %v303 = vpop.permute.xlu0 %302
        %304 = vrot.lane.b32.xlu0 %v288, 17
        %v305 = vpop.permute.xlu0 %304
        %306 = vrot.lane.b32.xlu0 %v290, 17
        %v307 = vpop.permute.xlu0 %306
        %308 = vrot.lane.b32.xlu0 %v277, 17
        %v309 = vpop.permute.xlu0 %308
        %310 = vrot.lane.b32.xlu0 %v279, 17
        %v311 = vpop.permute.xlu0 %310
        %312 = vrot.lane.b32.xlu0 %v281, 17
        %v313 = vpop.permute.xlu0 %312
        %314 = vrot.lane.b32.xlu0 %v283, 17
        %v315 = vpop.permute.xlu0 %314
        %316 = vrot.lane.b32.xlu0 %v285, 17
        %v317 = vpop.permute.xlu0 %316
        %318 = vrot.lane.b32.xlu0 %v287, 17
        %v319 = vpop.permute.xlu0 %318
        %320 = vrot.lane.b32.xlu0 %v289, 17
        %v321 = vpop.permute.xlu0 %320
        %322 = vrot.lane.b32.xlu0 %v291, 17
        %v323 = vpop.permute.xlu0 %322
        %vm324 = vcmp.lt.s32.totalorder %v206, 17
        %v325 = vsel %vm324, %v293, %v309
        %v326 = vsel %vm324, %v295, %v311
        %v327 = vsel %vm324, %v297, %v313
        %v328 = vsel %vm324, %v299, %v315
        %v329 = vsel %vm324, %v301, %v317
        %v330 = vsel %vm324, %v303, %v319
        %v331 = vsel %vm324, %v305, %v321
        %v332 = vsel %vm324, %v307, %v323
        %v333 = vsel %vm324, %v309, %v293
        %v334 = vsel %vm324, %v311, %v295
        %v335 = vsel %vm324, %v313, %v297
        %v336 = vsel %vm324, %v315, %v299
        %v337 = vsel %vm324, %v317, %v301
        %v338 = vsel %vm324, %v319, %v303
        %v339 = vsel %vm324, %v321, %v305
        %v340 = vsel %vm324, %v323, %v307
        %v341 = vpack.c.bf16 %v334, %v333
        %v342 = vpack.c.bf16 %v326, %v325
        %v343 = vpack.c.bf16 %v336, %v335
        %v344 = vpack.c.bf16 %v328, %v327
        %v345 = vpack.c.bf16 %v338, %v337
        %v346 = vpack.c.bf16 %v330, %v329
        %v347 = vpack.c.bf16 %v340, %v339
        %v348 = vpack.c.bf16 %v332, %v331
        %349 = vst [vmem:[#allocation2] sm:$0xff] %v341
        %350 = vst [vmem:[#allocation2 + $0x8] sm:$0xff] %v342
        %351 = vst [vmem:[#allocation2 + $0x10] sm:$0xff] %v343
        %352 = vst [vmem:[#allocation2 + $0x18] sm:$0xff] %v344
        %353 = vst [vmem:[#allocation2 + $0x20] sm:$0xff] %v345
        %354 = vst [vmem:[#allocation2 + $0x28] sm:$0xff] %v346
        %355 = vst [vmem:[#allocation2 + $0x30] sm:$0xff] %v347
        %356 = vst [vmem:[#allocation2 + $0x38] sm:$0xff] %v348
        %357 = vrot.lane.b32.xlu0 %v236, 16
        %v358 = vpop.permute.xlu0 %357
        %359 = vrot.lane.b32.xlu0 %v238, 16
        %v360 = vpop.permute.xlu0 %359
        %361 = vrot.lane.b32.xlu0 %v240, 16
        %v362 = vpop.permute.xlu0 %361
        %363 = vrot.lane.b32.xlu0 %v242, 16
        %v364 = vpop.permute.xlu0 %363
        %365 = vrot.lane.b32.xlu0 %v244, 16
        %v366 = vpop.permute.xlu0 %365
        %367 = vrot.lane.b32.xlu0 %v246, 16
        %v368 = vpop.permute.xlu0 %367
        %369 = vrot.lane.b32.xlu0 %v248, 16
        %v370 = vpop.permute.xlu0 %369
        %371 = vrot.lane.b32.xlu0 %v250, 16
        %v372 = vpop.permute.xlu0 %371
        %373 = vrot.lane.b32.xlu0 %v237, 16
        %v374 = vpop.permute.xlu0 %373
        %375 = vrot.lane.b32.xlu0 %v239, 16
        %v376 = vpop.permute.xlu0 %375
        %377 = vrot.lane.b32.xlu0 %v241, 16
        %v378 = vpop.permute.xlu0 %377
        %379 = vrot.lane.b32.xlu0 %v243, 16
        %v380 = vpop.permute.xlu0 %379
        %381 = vrot.lane.b32.xlu0 %v245, 16
        %v382 = vpop.permute.xlu0 %381
        %383 = vrot.lane.b32.xlu0 %v247, 16
        %v384 = vpop.permute.xlu0 %383
        %385 = vrot.lane.b32.xlu0 %v249, 16
        %v386 = vpop.permute.xlu0 %385
        %387 = vrot.lane.b32.xlu0 %v251, 16
        %v388 = vpop.permute.xlu0 %387
        %vm389 = vcmp.lt.s32.totalorder %v206, 16
        %v390 = vsel %vm389, %v358, %v374
        %v391 = vsel %vm389, %v360, %v376
        %v392 = vsel %vm389, %v362, %v378
        %v393 = vsel %vm389, %v364, %v380
        %v394 = vsel %vm389, %v366, %v382
        %v395 = vsel %vm389, %v368, %v384
        %v396 = vsel %vm389, %v370, %v386
        %v397 = vsel %vm389, %v372, %v388
        %v398 = vsel %vm389, %v374, %v358
        %v399 = vsel %vm389, %v376, %v360
        %v400 = vsel %vm389, %v378, %v362
        %v401 = vsel %vm389, %v380, %v364
        %v402 = vsel %vm389, %v382, %v366
        %v403 = vsel %vm389, %v384, %v368
        %v404 = vsel %vm389, %v386, %v370
        %v405 = vsel %vm389, %v388, %v372
        %v406 = vpack.c.bf16 %v399, %v398
        %v407 = vpack.c.bf16 %v391, %v390
        %v408 = vpack.c.bf16 %v401, %v400
        %v409 = vpack.c.bf16 %v393, %v392
        %v410 = vpack.c.bf16 %v403, %v402
        %v411 = vpack.c.bf16 %v395, %v394
        %v412 = vpack.c.bf16 %v405, %v404
        %v413 = vpack.c.bf16 %v397, %v396
        %414 = vst [vmem:[#allocation2 + $0x40] sm:$0xff] %v406
        %415 = vst [vmem:[#allocation2 + $0x48] sm:$0xff] %v407
        %416 = vst [vmem:[#allocation2 + $0x50] sm:$0xff] %v408
        %417 = vst [vmem:[#allocation2 + $0x58] sm:$0xff] %v409
        %418 = vst [vmem:[#allocation2 + $0x60] sm:$0xff] %v410
        %419 = vst [vmem:[#allocation2 + $0x68] sm:$0xff] %v411
        %420 = vst [vmem:[#allocation2 + $0x70] sm:$0xff] %v412
        %421 = vst [vmem:[#allocation2 + $0x78] sm:$0xff] %v413
        %422 = vrot.lane.b32.xlu0 %v256, 15
        %v423 = vpop.permute.xlu0 %422
        %424 = vrot.lane.b32.xlu0 %v258, 15
        %v425 = vpop.permute.xlu0 %424
        %426 = vrot.lane.b32.xlu0 %v260, 15
        %v427 = vpop.permute.xlu0 %426
        %428 = vrot.lane.b32.xlu0 %v262, 15
        %v429 = vpop.permute.xlu0 %428
        %430 = vrot.lane.b32.xlu0 %v264, 15
        %v431 = vpop.permute.xlu0 %430
        %432 = vrot.lane.b32.xlu0 %v266, 15
        %v433 = vpop.permute.xlu0 %432
        %434 = vrot.lane.b32.xlu0 %v268, 15
        %v435 = vpop.permute.xlu0 %434
        %436 = vrot.lane.b32.xlu0 %v270, 15
        %v437 = vpop.permute.xlu0 %436
        %438 = vrot.lane.b32.xlu0 %v257, 15
        %v439 = vpop.permute.xlu0 %438
        %440 = vrot.lane.b32.xlu0 %v259, 15
        %v441 = vpop.permute.xlu0 %440
        %442 = vrot.lane.b32.xlu0 %v261, 15
        %v443 = vpop.permute.xlu0 %442
        %444 = vrot.lane.b32.xlu0 %v263, 15
        %v445 = vpop.permute.xlu0 %444
        %446 = vrot.lane.b32.xlu0 %v265, 15
        %v447 = vpop.permute.xlu0 %446
        %448 = vrot.lane.b32.xlu0 %v267, 15
        %v449 = vpop.permute.xlu0 %448
        %450 = vrot.lane.b32.xlu0 %v269, 15
        %v451 = vpop.permute.xlu0 %450
        %452 = vrot.lane.b32.xlu0 %v271, 15
        %v453 = vpop.permute.xlu0 %452
        %vm454 = vcmp.lt.s32.totalorder %v206, 15
        %v455 = vsel %vm454, %v423, %v439
        %v456 = vsel %vm454, %v425, %v441
        %v457 = vsel %vm454, %v427, %v443
        %v458 = vsel %vm454, %v429, %v445
        %v459 = vsel %vm454, %v431, %v447
        %v460 = vsel %vm454, %v433, %v449
        %v461 = vsel %vm454, %v435, %v451
        %v462 = vsel %vm454, %v437, %v453
        %v463 = vsel %vm454, %v439, %v423
        %v464 = vsel %vm454, %v441, %v425
        %v465 = vsel %vm454, %v443, %v427
        %v466 = vsel %vm454, %v445, %v429
        %v467 = vsel %vm454, %v447, %v431
        %v468 = vsel %vm454, %v449, %v433
        %v469 = vsel %vm454, %v451, %v435
        %v470 = vsel %vm454, %v453, %v437
        %v471 = vpack.c.bf16 %v464, %v463
        %v472 = vpack.c.bf16 %v456, %v455
        %v473 = vpack.c.bf16 %v466, %v465
        %v474 = vpack.c.bf16 %v458, %v457
        %v475 = vpack.c.bf16 %v468, %v467
        %v476 = vpack.c.bf16 %v460, %v459
        %v477 = vpack.c.bf16 %v470, %v469
        %v478 = vpack.c.bf16 %v462, %v461
        %479 = vst [vmem:[#allocation2 + $0x80] sm:$0xff] %v471
        %480 = vst [vmem:[#allocation2 + $0x88] sm:$0xff] %v472
        %481 = vst [vmem:[#allocation2 + $0x90] sm:$0xff] %v473
        %482 = vst [vmem:[#allocation2 + $0x98] sm:$0xff] %v474
        %483 = vst [vmem:[#allocation2 + $0xa0] sm:$0xff] %v475
        %484 = vst [vmem:[#allocation2 + $0xa8] sm:$0xff] %v476
        %485 = vst [vmem:[#allocation2 + $0xb0] sm:$0xff] %v477
        %486 = vst [vmem:[#allocation2 + $0xb8] sm:$0xff] %v478
        %487 = vrot.lane.b32.xlu0 %v276, 1
        %v488 = vpop.permute.xlu0 %487
        %489 = vrot.lane.b32.xlu0 %v278, 1
        %v490 = vpop.permute.xlu0 %489
        %491 = vrot.lane.b32.xlu0 %v280, 1
        %v492 = vpop.permute.xlu0 %491
        %493 = vrot.lane.b32.xlu0 %v282, 1
        %v494 = vpop.permute.xlu0 %493
        %495 = vrot.lane.b32.xlu0 %v284, 1
        %v496 = vpop.permute.xlu0 %495
        %497 = vrot.lane.b32.xlu0 %v286, 1
        %v498 = vpop.permute.xlu0 %497
        %499 = vrot.lane.b32.xlu0 %v288, 1
        %v500 = vpop.permute.xlu0 %499
        %501 = vrot.lane.b32.xlu0 %v290, 1
        %v502 = vpop.permute.xlu0 %501
        %503 = vrot.lane.b32.xlu0 %v277, 1
        %v504 = vpop.permute.xlu0 %503
        %505 = vrot.lane.b32.xlu0 %v279, 1
        %v506 = vpop.permute.xlu0 %505
        %507 = vrot.lane.b32.xlu0 %v281, 1
        %v508 = vpop.permute.xlu0 %507
        %509 = vrot.lane.b32.xlu0 %v283, 1
        %v510 = vpop.permute.xlu0 %509
        %511 = vrot.lane.b32.xlu0 %v285, 1
        %v512 = vpop.permute.xlu0 %511
        %513 = vrot.lane.b32.xlu0 %v287, 1
        %v514 = vpop.permute.xlu0 %513
        %515 = vrot.lane.b32.xlu0 %v289, 1
        %v516 = vpop.permute.xlu0 %515
        %517 = vrot.lane.b32.xlu0 %v291, 1
        %v518 = vpop.permute.xlu0 %517
        %vm519 = vcmp.lt.s32.totalorder %v206, 1
        %v520 = vsel %vm519, %v488, %v504
        %v521 = vsel %vm519, %v490, %v506
        %v522 = vsel %vm519, %v492, %v508
        %v523 = vsel %vm519, %v494, %v510
        %v524 = vsel %vm519, %v496, %v512
        %v525 = vsel %vm519, %v498, %v514
        %v526 = vsel %vm519, %v500, %v516
        %v527 = vsel %vm519, %v502, %v518
        %v528 = vsel %vm519, %v504, %v488
        %v529 = vsel %vm519, %v506, %v490
        %v530 = vsel %vm519, %v508, %v492
        %v531 = vsel %vm519, %v510, %v494
        %v532 = vsel %vm519, %v512, %v496
        %v533 = vsel %vm519, %v514, %v498
        %v534 = vsel %vm519, %v516, %v500
        %v535 = vsel %vm519, %v518, %v502
        %v536 = vpack.c.bf16 %v529, %v528
        %v537 = vpack.c.bf16 %v521, %v520
        %v538 = vpack.c.bf16 %v531, %v530
        %v539 = vpack.c.bf16 %v523, %v522
        %v540 = vpack.c.bf16 %v533, %v532
        %v541 = vpack.c.bf16 %v525, %v524
        %v542 = vpack.c.bf16 %v535, %v534
        %v543 = vpack.c.bf16 %v527, %v526
        %544 = vst [vmem:[#allocation2 + $0xc0] sm:$0xff] %v536
        %545 = vst [vmem:[#allocation2 + $0xc8] sm:$0xff] %v537
        %546 = vst [vmem:[#allocation2 + $0xd0] sm:$0xff] %v538
        %547 = vst [vmem:[#allocation2 + $0xd8] sm:$0xff] %v539
        %548 = vst [vmem:[#allocation2 + $0xe0] sm:$0xff] %v540
        %549 = vst [vmem:[#allocation2 + $0xe8] sm:$0xff] %v541
        %550 = vst [vmem:[#allocation2 + $0xf0] sm:$0xff] %v542
        %551 = vst [vmem:[#allocation2 + $0xf8] sm:$0xff] %v543
        %v552 = vpack.c.bf16 %v238, %v236
        %v553 = vpack.c.bf16 %v239, %v237
        %v554 = vpack.c.bf16 %v242, %v240
        %v555 = vpack.c.bf16 %v243, %v241
        %v556 = vpack.c.bf16 %v246, %v244
        %v557 = vpack.c.bf16 %v247, %v245
        %v558 = vpack.c.bf16 %v250, %v248
        %v559 = vpack.c.bf16 %v251, %v249
        %560 = vst [vmem:[#allocation2 + $0x100] sm:$0xff] %v552
        %561 = vst [vmem:[#allocation2 + $0x108] sm:$0xff] %v553
        %562 = vst [vmem:[#allocation2 + $0x110] sm:$0xff] %v554
        %563 = vst [vmem:[#allocation2 + $0x118] sm:$0xff] %v555
        %564 = vst [vmem:[#allocation2 + $0x120] sm:$0xff] %v556
        %565 = vst [vmem:[#allocation2 + $0x128] sm:$0xff] %v557
        %566 = vst [vmem:[#allocation2 + $0x130] sm:$0xff] %v558
        %567 = vst [vmem:[#allocation2 + $0x138] sm:$0xff] %v559
        %568 = vrot.lane.b32.xlu0 %v256, 127
        %v569 = vpop.permute.xlu0 %568
        %570 = vrot.lane.b32.xlu0 %v258, 127
        %v571 = vpop.permute.xlu0 %570
        %572 = vrot.lane.b32.xlu0 %v260, 127
        %v573 = vpop.permute.xlu0 %572
        %574 = vrot.lane.b32.xlu0 %v262, 127
        %v575 = vpop.permute.xlu0 %574
        %576 = vrot.lane.b32.xlu0 %v264, 127
        %v577 = vpop.permute.xlu0 %576
        %578 = vrot.lane.b32.xlu0 %v266, 127
        %v579 = vpop.permute.xlu0 %578
        %580 = vrot.lane.b32.xlu0 %v268, 127
        %v581 = vpop.permute.xlu0 %580
        %582 = vrot.lane.b32.xlu0 %v270, 127
        %v583 = vpop.permute.xlu0 %582
        %584 = vrot.lane.b32.xlu0 %v257, 127
        %v585 = vpop.permute.xlu0 %584
        %586 = vrot.lane.b32.xlu0 %v259, 127
        %v587 = vpop.permute.xlu0 %586
        %588 = vrot.lane.b32.xlu0 %v261, 127
        %v589 = vpop.permute.xlu0 %588
        %590 = vrot.lane.b32.xlu0 %v263, 127
        %v591 = vpop.permute.xlu0 %590
        %592 = vrot.lane.b32.xlu0 %v265, 127
        %v593 = vpop.permute.xlu0 %592
        %594 = vrot.lane.b32.xlu0 %v267, 127
        %v595 = vpop.permute.xlu0 %594
        %596 = vrot.lane.b32.xlu0 %v269, 127
        %v597 = vpop.permute.xlu0 %596
        %598 = vrot.lane.b32.xlu0 %v271, 127
        %v599 = vpop.permute.xlu0 %598
        %vm600 = vcmp.lt.s32.totalorder %v206, 127
        %v601 = vsel %vm600, %v569, %v585
        %v602 = vsel %vm600, %v571, %v587
        %v603 = vsel %vm600, %v573, %v589
        %v604 = vsel %vm600, %v575, %v591
        %v605 = vsel %vm600, %v577, %v593
        %v606 = vsel %vm600, %v579, %v595
        %v607 = vsel %vm600, %v581, %v597
        %v608 = vsel %vm600, %v583, %v599
        %v609 = vsel %vm600, %v585, %v569
        %v610 = vsel %vm600, %v587, %v571
        %v611 = vsel %vm600, %v589, %v573
        %v612 = vsel %vm600, %v591, %v575
        %v613 = vsel %vm600, %v593, %v577
        %v614 = vsel %vm600, %v595, %v579
        %v615 = vsel %vm600, %v597, %v581
        %v616 = vsel %vm600, %v599, %v583
        %v617 = vpack.c.bf16 %v602, %v601
        %v618 = vpack.c.bf16 %v610, %v609
        %v619 = vpack.c.bf16 %v604, %v603
        %v620 = vpack.c.bf16 %v612, %v611
        %v621 = vpack.c.bf16 %v606, %v605
        %v622 = vpack.c.bf16 %v614, %v613
        %v623 = vpack.c.bf16 %v608, %v607
        %v624 = vpack.c.bf16 %v616, %v615
        %625 = vst [vmem:[#allocation2 + $0x140] sm:$0xff] %v617
        %626 = vst [vmem:[#allocation2 + $0x148] sm:$0xff] %v618
        %627 = vst [vmem:[#allocation2 + $0x150] sm:$0xff] %v619
        %628 = vst [vmem:[#allocation2 + $0x158] sm:$0xff] %v620
        %629 = vst [vmem:[#allocation2 + $0x160] sm:$0xff] %v621
        %630 = vst [vmem:[#allocation2 + $0x168] sm:$0xff] %v622
        %631 = vst [vmem:[#allocation2 + $0x170] sm:$0xff] %v623
        %632 = vst [vmem:[#allocation2 + $0x178] sm:$0xff] %v624
        %633 = vrot.lane.b32.xlu0 %v276, 113
        %v634 = vpop.permute.xlu0 %633
        %635 = vrot.lane.b32.xlu0 %v278, 113
        %v636 = vpop.permute.xlu0 %635
        %637 = vrot.lane.b32.xlu0 %v280, 113
        %v638 = vpop.permute.xlu0 %637
        %639 = vrot.lane.b32.xlu0 %v282, 113
        %v640 = vpop.permute.xlu0 %639
        %641 = vrot.lane.b32.xlu0 %v284, 113
        %v642 = vpop.permute.xlu0 %641
        %643 = vrot.lane.b32.xlu0 %v286, 113
        %v644 = vpop.permute.xlu0 %643
        %645 = vrot.lane.b32.xlu0 %v288, 113
        %v646 = vpop.permute.xlu0 %645
        %647 = vrot.lane.b32.xlu0 %v290, 113
        %v648 = vpop.permute.xlu0 %647
        %649 = vrot.lane.b32.xlu0 %v277, 113
        %v650 = vpop.permute.xlu0 %649
        %651 = vrot.lane.b32.xlu0 %v279, 113
        %v652 = vpop.permute.xlu0 %651
        %653 = vrot.lane.b32.xlu0 %v281, 113
        %v654 = vpop.permute.xlu0 %653
        %655 = vrot.lane.b32.xlu0 %v283, 113
        %v656 = vpop.permute.xlu0 %655
        %657 = vrot.lane.b32.xlu0 %v285, 113
        %v658 = vpop.permute.xlu0 %657
        %659 = vrot.lane.b32.xlu0 %v287, 113
        %v660 = vpop.permute.xlu0 %659
        %661 = vrot.lane.b32.xlu0 %v289, 113
        %v662 = vpop.permute.xlu0 %661
        %663 = vrot.lane.b32.xlu0 %v291, 113
        %v664 = vpop.permute.xlu0 %663
        %vm665 = vcmp.lt.s32.totalorder %v206, 113
        %v666 = vsel %vm665, %v634, %v650
        %v667 = vsel %vm665, %v636, %v652
        %v668 = vsel %vm665, %v638, %v654
        %v669 = vsel %vm665, %v640, %v656
        %v670 = vsel %vm665, %v642, %v658
        %v671 = vsel %vm665, %v644, %v660
        %v672 = vsel %vm665, %v646, %v662
        %v673 = vsel %vm665, %v648, %v664
        %v674 = vsel %vm665, %v650, %v634
        %v675 = vsel %vm665, %v652, %v636
        %v676 = vsel %vm665, %v654, %v638
        %v677 = vsel %vm665, %v656, %v640
        %v678 = vsel %vm665, %v658, %v642
        %v679 = vsel %vm665, %v660, %v644
        %v680 = vsel %vm665, %v662, %v646
        %v681 = vsel %vm665, %v664, %v648
        %v682 = vpack.c.bf16 %v667, %v666
        %v683 = vpack.c.bf16 %v675, %v674
        %v684 = vpack.c.bf16 %v669, %v668
        %v685 = vpack.c.bf16 %v677, %v676
        %v686 = vpack.c.bf16 %v671, %v670
        %v687 = vpack.c.bf16 %v679, %v678
        %v688 = vpack.c.bf16 %v673, %v672
        %v689 = vpack.c.bf16 %v681, %v680
        %690 = vst [vmem:[#allocation2 + $0x180] sm:$0xff] %v682
        %691 = vst [vmem:[#allocation2 + $0x188] sm:$0xff] %v683
        %692 = vst [vmem:[#allocation2 + $0x190] sm:$0xff] %v684
        %693 = vst [vmem:[#allocation2 + $0x198] sm:$0xff] %v685
        %694 = vst [vmem:[#allocation2 + $0x1a0] sm:$0xff] %v686
        %695 = vst [vmem:[#allocation2 + $0x1a8] sm:$0xff] %v687
        %696 = vst [vmem:[#allocation2 + $0x1b0] sm:$0xff] %v688
        %697 = vst [vmem:[#allocation2 + $0x1b8] sm:$0xff] %v689
        %698 = vrot.lane.b32.xlu0 %v236, 112
        %v699 = vpop.permute.xlu0 %698
        %700 = vrot.lane.b32.xlu0 %v238, 112
        %v701 = vpop.permute.xlu0 %700
        %702 = vrot.lane.b32.xlu0 %v240, 112
        %v703 = vpop.permute.xlu0 %702
        %704 = vrot.lane.b32.xlu0 %v242, 112
        %v705 = vpop.permute.xlu0 %704
        %706 = vrot.lane.b32.xlu0 %v244, 112
        %v707 = vpop.permute.xlu0 %706
        %708 = vrot.lane.b32.xlu0 %v246, 112
        %v709 = vpop.permute.xlu0 %708
        %710 = vrot.lane.b32.xlu0 %v248, 112
        %v711 = vpop.permute.xlu0 %710
        %712 = vrot.lane.b32.xlu0 %v250, 112
        %v713 = vpop.permute.xlu0 %712
        %714 = vrot.lane.b32.xlu0 %v237, 112
        %v715 = vpop.permute.xlu0 %714
        %716 = vrot.lane.b32.xlu0 %v239, 112
        %v717 = vpop.permute.xlu0 %716
        %718 = vrot.lane.b32.xlu0 %v241, 112
        %v719 = vpop.permute.xlu0 %718
        %720 = vrot.lane.b32.xlu0 %v243, 112
        %v721 = vpop.permute.xlu0 %720
        %722 = vrot.lane.b32.xlu0 %v245, 112
        %v723 = vpop.permute.xlu0 %722
        %724 = vrot.lane.b32.xlu0 %v247, 112
        %v725 = vpop.permute.xlu0 %724
        %726 = vrot.lane.b32.xlu0 %v249, 112
        %v727 = vpop.permute.xlu0 %726
        %728 = vrot.lane.b32.xlu0 %v251, 112
        %v729 = vpop.permute.xlu0 %728
        %vm730 = vcmp.lt.s32.totalorder %v206, 112
        %v731 = vsel %vm730, %v699, %v715
        %v732 = vsel %vm730, %v701, %v717
        %v733 = vsel %vm730, %v703, %v719
        %v734 = vsel %vm730, %v705, %v721
        %v735 = vsel %vm730, %v707, %v723
        %v736 = vsel %vm730, %v709, %v725
        %v737 = vsel %vm730, %v711, %v727
        %v738 = vsel %vm730, %v713, %v729
        %v739 = vsel %vm730, %v715, %v699
        %v740 = vsel %vm730, %v717, %v701
        %v741 = vsel %vm730, %v719, %v703
        %v742 = vsel %vm730, %v721, %v705
        %v743 = vsel %vm730, %v723, %v707
        %v744 = vsel %vm730, %v725, %v709
        %v745 = vsel %vm730, %v727, %v711
        %v746 = vsel %vm730, %v729, %v713
        %v747 = vpack.c.bf16 %v732, %v731
        %v748 = vpack.c.bf16 %v740, %v739
        %v749 = vpack.c.bf16 %v734, %v733
        %v750 = vpack.c.bf16 %v742, %v741
        %v751 = vpack.c.bf16 %v736, %v735
        %v752 = vpack.c.bf16 %v744, %v743
        %v753 = vpack.c.bf16 %v738, %v737
        %v754 = vpack.c.bf16 %v746, %v745
        %755 = vst [vmem:[#allocation2 + $0x1c0] sm:$0xff] %v747
        %756 = vst [vmem:[#allocation2 + $0x1c8] sm:$0xff] %v748
        %757 = vst [vmem:[#allocation2 + $0x1d0] sm:$0xff] %v749
        %758 = vst [vmem:[#allocation2 + $0x1d8] sm:$0xff] %v750
        %759 = vst [vmem:[#allocation2 + $0x1e0] sm:$0xff] %v751
        %760 = vst [vmem:[#allocation2 + $0x1e8] sm:$0xff] %v752
        %761 = vst [vmem:[#allocation2 + $0x1f0] sm:$0xff] %v753
        %762 = vst [vmem:[#allocation2 + $0x1f8] sm:$0xff] %v754
        %763 = vrot.lane.b32.xlu0 %v256, 111
        %v764 = vpop.permute.xlu0 %763
        %765 = vrot.lane.b32.xlu0 %v258, 111
        %v766 = vpop.permute.xlu0 %765
        %767 = vrot.lane.b32.xlu0 %v260, 111
        %v768 = vpop.permute.xlu0 %767
        %769 = vrot.lane.b32.xlu0 %v262, 111
        %v770 = vpop.permute.xlu0 %769
        %771 = vrot.lane.b32.xlu0 %v264, 111
        %v772 = vpop.permute.xlu0 %771
        %773 = vrot.lane.b32.xlu0 %v266, 111
        %v774 = vpop.permute.xlu0 %773
        %775 = vrot.lane.b32.xlu0 %v268, 111
        %v776 = vpop.permute.xlu0 %775
        %777 = vrot.lane.b32.xlu0 %v270, 111
        %v778 = vpop.permute.xlu0 %777
        %779 = vrot.lane.b32.xlu0 %v257, 111
        %v780 = vpop.permute.xlu0 %779
        %781 = vrot.lane.b32.xlu0 %v259, 111
        %v782 = vpop.permute.xlu0 %781
        %783 = vrot.lane.b32.xlu0 %v261, 111
        %v784 = vpop.permute.xlu0 %783
        %785 = vrot.lane.b32.xlu0 %v263, 111
        %v786 = vpop.permute.xlu0 %785
        %787 = vrot.lane.b32.xlu0 %v265, 111
        %v788 = vpop.permute.xlu0 %787
        %789 = vrot.lane.b32.xlu0 %v267, 111
        %v790 = vpop.permute.xlu0 %789
        %791 = vrot.lane.b32.xlu0 %v269, 111
        %v792 = vpop.permute.xlu0 %791
        %793 = vrot.lane.b32.xlu0 %v271, 111
        %v794 = vpop.permute.xlu0 %793
        %vm795 = vcmp.lt.s32.totalorder %v206, 111
        %v796 = vsel %vm795, %v764, %v780
        %v797 = vsel %vm795, %v766, %v782
        %v798 = vsel %vm795, %v768, %v784
        %v799 = vsel %vm795, %v770, %v786
        %v800 = vsel %vm795, %v772, %v788
        %v801 = vsel %vm795, %v774, %v790
        %v802 = vsel %vm795, %v776, %v792
        %v803 = vsel %vm795, %v778, %v794
        %v804 = vsel %vm795, %v780, %v764
        %v805 = vsel %vm795, %v782, %v766
        %v806 = vsel %vm795, %v784, %v768
        %v807 = vsel %vm795, %v786, %v770
        %v808 = vsel %vm795, %v788, %v772
        %v809 = vsel %vm795, %v790, %v774
        %v810 = vsel %vm795, %v792, %v776
        %v811 = vsel %vm795, %v794, %v778
        %v812 = vpack.c.bf16 %v797, %v796
        %v813 = vpack.c.bf16 %v805, %v804
        %v814 = vpack.c.bf16 %v799, %v798
        %v815 = vpack.c.bf16 %v807, %v806
        %v816 = vpack.c.bf16 %v801, %v800
        %v817 = vpack.c.bf16 %v809, %v808
        %v818 = vpack.c.bf16 %v803, %v802
        %v819 = vpack.c.bf16 %v811, %v810
        %820 = vst [vmem:[#allocation2 + $0x200] sm:$0xff] %v812
        %821 = vst [vmem:[#allocation2 + $0x208] sm:$0xff] %v813
        %822 = vst [vmem:[#allocation2 + $0x210] sm:$0xff] %v814
        %823 = vst [vmem:[#allocation2 + $0x218] sm:$0xff] %v815
        %824 = vst [vmem:[#allocation2 + $0x220] sm:$0xff] %v816
        %825 = vst [vmem:[#allocation2 + $0x228] sm:$0xff] %v817
        %826 = vst [vmem:[#allocation2 + $0x230] sm:$0xff] %v818
        %827 = vst [vmem:[#allocation2 + $0x238] sm:$0xff] %v819
        %vm828 = vcmask 130048
        %829 = vst.msk [vmem:[#allocation2] sm:$0xff] %vm828, 0
        %830 = vst.msk [vmem:[#allocation2 + $0x10] sm:$0xff] %vm828, 0
        %831 = vst.msk [vmem:[#allocation2 + $0x20] sm:$0xff] %vm828, 0
        %832 = vst.msk [vmem:[#allocation2 + $0x30] sm:$0xff] %vm828, 0
        %833 = vst.msk [vmem:[#allocation2 + $0x40] sm:$0xff] %vm828, 0
        %834 = vst.msk [vmem:[#allocation2 + $0x50] sm:$0xff] %vm828, 0
        %835 = vst.msk [vmem:[#allocation2 + $0x60] sm:$0xff] %vm828, 0
        %836 = vst.msk [vmem:[#allocation2 + $0x70] sm:$0xff] %vm828, 0
        %837 = vst.msk [vmem:[#allocation2 + $0x80] sm:$0xff] %vm828, 0
        %838 = vst.msk [vmem:[#allocation2 + $0x90] sm:$0xff] %vm828, 0
        %839 = vst.msk [vmem:[#allocation2 + $0xa0] sm:$0xff] %vm828, 0
        %840 = vst.msk [vmem:[#allocation2 + $0xb0] sm:$0xff] %vm828, 0
        %vm841 = vcmask 1048448
        %842 = vst.msk [vmem:[#allocation2 + $0x188] sm:$0xff] %vm841, 0
        %843 = vst.msk [vmem:[#allocation2 + $0x198] sm:$0xff] %vm841, 0
        %844 = vst.msk [vmem:[#allocation2 + $0x1a8] sm:$0xff] %vm841, 0
        %845 = vst.msk [vmem:[#allocation2 + $0x1b8] sm:$0xff] %vm841, 0
        %846 = vst.msk [vmem:[#allocation2 + $0x1c8] sm:$0xff] %vm841, 0
        %847 = vst.msk [vmem:[#allocation2 + $0x1d8] sm:$0xff] %vm841, 0
        %848 = vst.msk [vmem:[#allocation2 + $0x1e8] sm:$0xff] %vm841, 0
        %849 = vst.msk [vmem:[#allocation2 + $0x1f8] sm:$0xff] %vm841, 0
        %850 = vst.msk [vmem:[#allocation2 + $0x208] sm:$0xff] %vm841, 0
        %851 = vst.msk [vmem:[#allocation2 + $0x218] sm:$0xff] %vm841, 0
        %852 = vst.msk [vmem:[#allocation2 + $0x228] sm:$0xff] %vm841, 0
        %853 = vst.msk [vmem:[#allocation2 + $0x238] sm:$0xff] %vm841, 0
        %v854 = vld [vmem:[#allocation6] sm:$0xff]
        %v855 = vld [vmem:[#allocation6 + $0x8] sm:$0xff]
        %v856 = vld [vmem:[#allocation6 + $0x10] sm:$0xf]
        %v857 = vld [vmem:[#allocation6 + $0x14] sm:$0xff]
        %v858 = vld [vmem:[#allocation6 + $0x1c] sm:$0xff]
        %v859 = vld [vmem:[#allocation6 + $0x24] sm:$0xf]
        %v860 = vld [vmem:[#allocation6 + $0x28] sm:$0xff]
        %v861 = vld [vmem:[#allocation6 + $0x30] sm:$0xff]
        %v862 = vld [vmem:[#allocation6 + $0x38] sm:$0xf]
        %v863 = vld [vmem:[#allocation6 + $0x3c] sm:$0xff]
        %v864 = vld [vmem:[#allocation6 + $0x44] sm:$0xff]
        %v865 = vld [vmem:[#allocation6 + $0x4c] sm:$0xf]
        %v866 = vld [vmem:[#allocation6 + $0x50] sm:$0xff]
        %v867 = vld [vmem:[#allocation6 + $0x58] sm:$0xff]
        %v868 = vld [vmem:[#allocation6 + $0x60] sm:$0xf]
        %v869 = vld [vmem:[#allocation6 + $0x64] sm:$0xff]
        %v870 = vld [vmem:[#allocation6 + $0x6c] sm:$0xff]
        %v871 = vld [vmem:[#allocation6 + $0x74] sm:$0xf]
        %v872 = vld [vmem:[#allocation6 + $0x78] sm:$0xff]
        %v873 = vld [vmem:[#allocation6 + $0x80] sm:$0xff]
        %v874 = vld [vmem:[#allocation6 + $0x88] sm:$0xf]
        %v875 = vld [vmem:[#allocation6 + $0x8c] sm:$0xff]
        %v876 = vld [vmem:[#allocation6 + $0x94] sm:$0xff]
        %v877 = vld [vmem:[#allocation6 + $0x9c] sm:$0xf]
        %v878 = vld [vmem:[#allocation2] sm:$0xff]
        %v879 = vld [vmem:[#allocation2 + $0x8] sm:$0xff]
        %v880 = vld [vmem:[#allocation2 + $0x10] sm:$0xff]
        %v881 = vld [vmem:[#allocation2 + $0x18] sm:$0xff]
        %v882 = vld [vmem:[#allocation2 + $0x20] sm:$0xff]
        %v883 = vld [vmem:[#allocation2 + $0x28] sm:$0xff]
        %v884 = vld [vmem:[#allocation2 + $0x30] sm:$0xff]
        %v885 = vld [vmem:[#allocation2 + $0x38] sm:$0xff]
        %v886 = vld [vmem:[#allocation2 + $0x40] sm:$0xff]
        %v887 = vld [vmem:[#allocation2 + $0x48] sm:$0xff]
        %v888 = vld [vmem:[#allocation2 + $0x50] sm:$0xff]
        %v889 = vld [vmem:[#allocation2 + $0x58] sm:$0xff]
        %v890 = vld [vmem:[#allocation2 + $0x60] sm:$0xff]
        %v891 = vld [vmem:[#allocation2 + $0x68] sm:$0xff]
        %v892 = vld [vmem:[#allocation2 + $0x70] sm:$0xff]
        %v893 = vld [vmem:[#allocation2 + $0x78] sm:$0xff]
        %v894 = vld [vmem:[#allocation2 + $0x80] sm:$0xff]
        %v895 = vld [vmem:[#allocation2 + $0x88] sm:$0xff]
        %v896 = vld [vmem:[#allocation2 + $0x90] sm:$0xff]
        %v897 = vld [vmem:[#allocation2 + $0x98] sm:$0xff]
        %v898 = vld [vmem:[#allocation2 + $0xa0] sm:$0xff]
        %v899 = vld [vmem:[#allocation2 + $0xa8] sm:$0xff]
        %v900 = vld [vmem:[#allocation2 + $0xb0] sm:$0xff]
        %v901 = vld [vmem:[#allocation2 + $0xb8] sm:$0xff]
        %v902 = vld [vmem:[#allocation2 + $0xc0] sm:$0xff]
        %v903 = vld [vmem:[#allocation2 + $0xc8] sm:$0xff]
        %v904 = vld [vmem:[#allocation2 + $0xd0] sm:$0xff]
        %v905 = vld [vmem:[#allocation2 + $0xd8] sm:$0xff]
        %v906 = vld [vmem:[#allocation2 + $0xe0] sm:$0xff]
        %v907 = vld [vmem:[#allocation2 + $0xe8] sm:$0xff]
        %v908 = vld [vmem:[#allocation2 + $0xf0] sm:$0xff]
        %v909 = vld [vmem:[#allocation2 + $0xf8] sm:$0xff]
        %v910 = vld [vmem:[#allocation2 + $0x100] sm:$0xff]
        %v911 = vld [vmem:[#allocation2 + $0x108] sm:$0xff]
        %v912 = vld [vmem:[#allocation2 + $0x110] sm:$0xff]
        %v913 = vld [vmem:[#allocation2 + $0x118] sm:$0xff]
        %v914 = vld [vmem:[#allocation2 + $0x120] sm:$0xff]
        %v915 = vld [vmem:[#allocation2 + $0x128] sm:$0xff]
        %v916 = vld [vmem:[#allocation2 + $0x130] sm:$0xff]
        %v917 = vld [vmem:[#allocation2 + $0x138] sm:$0xff]
        %v918 = vld [vmem:[#allocation2 + $0x140] sm:$0xff]
        %v919 = vld [vmem:[#allocation2 + $0x148] sm:$0xff]
        %v920 = vld [vmem:[#allocation2 + $0x150] sm:$0xff]
        %v921 = vld [vmem:[#allocation2 + $0x158] sm:$0xff]
        %v922 = vld [vmem:[#allocation2 + $0x160] sm:$0xff]
        %v923 = vld [vmem:[#allocation2 + $0x168] sm:$0xff]
        %v924 = vld [vmem:[#allocation2 + $0x170] sm:$0xff]
        %v925 = vld [vmem:[#allocation2 + $0x178] sm:$0xff]
        %v926 = vld [vmem:[#allocation2 + $0x180] sm:$0xff]
        %v927 = vld [vmem:[#allocation2 + $0x188] sm:$0xff]
        %v928 = vld [vmem:[#allocation2 + $0x190] sm:$0xff]
        %v929 = vld [vmem:[#allocation2 + $0x198] sm:$0xff]
        %v930 = vld [vmem:[#allocation2 + $0x1a0] sm:$0xff]
        %v931 = vld [vmem:[#allocation2 + $0x1a8] sm:$0xff]
        %v932 = vld [vmem:[#allocation2 + $0x1b0] sm:$0xff]
        %v933 = vld [vmem:[#allocation2 + $0x1b8] sm:$0xff]
        %v934 = vld [vmem:[#allocation2 + $0x1c0] sm:$0xff]
        %v935 = vld [vmem:[#allocation2 + $0x1c8] sm:$0xff]
        %v936 = vld [vmem:[#allocation2 + $0x1d0] sm:$0xff]
        %v937 = vld [vmem:[#allocation2 + $0x1d8] sm:$0xff]
        %v938 = vld [vmem:[#allocation2 + $0x1e0] sm:$0xff]
        %v939 = vld [vmem:[#allocation2 + $0x1e8] sm:$0xff]
        %v940 = vld [vmem:[#allocation2 + $0x1f0] sm:$0xff]
        %v941 = vld [vmem:[#allocation2 + $0x1f8] sm:$0xff]
        %v942 = vld [vmem:[#allocation2 + $0x200] sm:$0xff]
        %v943 = vld [vmem:[#allocation2 + $0x208] sm:$0xff]
        %v944 = vld [vmem:[#allocation2 + $0x210] sm:$0xff]
        %v945 = vld [vmem:[#allocation2 + $0x218] sm:$0xff]
        %v946 = vld [vmem:[#allocation2 + $0x220] sm:$0xff]
        %v947 = vld [vmem:[#allocation2 + $0x228] sm:$0xff]
        %v948 = vld [vmem:[#allocation2 + $0x230] sm:$0xff]
        %v949 = vld [vmem:[#allocation2 + $0x238] sm:$0xff]
        %v950 = vld [vmem:[%s2] sm:$0xff]
        %v951 = vld [vmem:[%s2 + $0x8] sm:$0xff]
        %v952 = vld [vmem:[%s2 + $0x10] sm:$0xff]
        %v953 = vld [vmem:[%s2 + $0x18] sm:$0xff]
        %v954 = vld [vmem:[%s2 + $0x20] sm:$0xff]
        %v955 = vld [vmem:[%s2 + $0x28] sm:$0xff]
        %v956 = vld [vmem:[%s2 + $0x30] sm:$0xff]
        %v957 = vld [vmem:[%s2 + $0x38] sm:$0xff]
        %959 = vset.pattern.permute.xlu0 0
        %960 = vperm.xlu0 %959, %v950
        %v961 = vpop.permute.xlu0 %960
        %964 = vset.pattern.permute.xlu0 0
        %965 = vperm.xlu0 %964, %v951
        %v966 = vpop.permute.xlu0 %965
        %969 = vset.pattern.permute.xlu0 0
        %970 = vperm.xlu0 %969, %v952
        %v971 = vpop.permute.xlu0 %970
        %974 = vset.pattern.permute.xlu0 0
        %975 = vperm.xlu0 %974, %v953
        %v976 = vpop.permute.xlu0 %975
        %979 = vset.pattern.permute.xlu0 0
        %980 = vperm.xlu0 %979, %v954
        %v981 = vpop.permute.xlu0 %980
        %984 = vset.pattern.permute.xlu0 0
        %985 = vperm.xlu0 %984, %v955
        %v986 = vpop.permute.xlu0 %985
        %989 = vset.pattern.permute.xlu0 0
        %990 = vperm.xlu0 %989, %v956
        %v991 = vpop.permute.xlu0 %990
        %994 = vset.pattern.permute.xlu0 0
        %995 = vperm.xlu0 %994, %v957
        %v996 = vpop.permute.xlu0 %995
        %v1022 = vunpack.c.l.b16 %v854
        %v1023 = vunpack.c.h.b16 %v854
        %v1024 = vunpack.c.l.b16 %v855
        %v1025 = vunpack.c.h.b16 %v855
        %v1026 = vunpack.c.l.b16 %v856
        %v1027 = vunpack.c.l.b16 %v857
        %v1028 = vunpack.c.h.b16 %v857
        %v1029 = vunpack.c.l.b16 %v858
        %v1030 = vunpack.c.h.b16 %v858
        %v1031 = vunpack.c.l.b16 %v859
        %v1032 = vunpack.c.l.b16 %v860
        %v1033 = vunpack.c.h.b16 %v860
        %v1034 = vunpack.c.l.b16 %v861
        %v1035 = vunpack.c.h.b16 %v861
        %v1036 = vunpack.c.l.b16 %v862
        %v1037 = vunpack.c.l.b16 %v863
        %v1038 = vunpack.c.h.b16 %v863
        %v1039 = vunpack.c.l.b16 %v864
        %v1040 = vunpack.c.h.b16 %v864
        %v1041 = vunpack.c.l.b16 %v865
        %v1042 = vunpack.c.l.b16 %v866
        %v1043 = vunpack.c.h.b16 %v866
        %v1044 = vunpack.c.l.b16 %v867
        %v1045 = vunpack.c.h.b16 %v867
        %v1046 = vunpack.c.l.b16 %v868
        %v1047 = vunpack.c.l.b16 %v869
        %v1048 = vunpack.c.h.b16 %v869
        %v1049 = vunpack.c.l.b16 %v870
        %v1050 = vunpack.c.h.b16 %v870
        %v1051 = vunpack.c.l.b16 %v871
        %v1052 = vunpack.c.l.b16 %v872
        %v1053 = vunpack.c.h.b16 %v872
        %v1054 = vunpack.c.l.b16 %v873
        %v1055 = vunpack.c.h.b16 %v873
        %v1056 = vunpack.c.l.b16 %v874
        %v1057 = vunpack.c.l.b16 %v875
        %v1058 = vunpack.c.h.b16 %v875
        %v1059 = vunpack.c.l.b16 %v876
        %v1060 = vunpack.c.h.b16 %v876
        %v1061 = vunpack.c.l.b16 %v877
        %v1062 = vpack.c.b16 %v1027, %v1022
        %v1063 = vpack.c.b16 %v1028, %v1023
        %v1064 = vpack.c.b16 %v1029, %v1024
        %v1065 = vpack.c.b16 %v1030, %v1025
        %v1066 = vpack.c.b16 %v1031, %v1026
        %v1067 = vpack.c.b16 %v1037, %v1032
        %v1068 = vpack.c.b16 %v1038, %v1033
        %v1069 = vpack.c.b16 %v1039, %v1034
        %v1070 = vpack.c.b16 %v1040, %v1035
        %v1071 = vpack.c.b16 %v1041, %v1036
        %v1072 = vpack.c.b16 %v1047, %v1042
        %v1073 = vpack.c.b16 %v1048, %v1043
        %v1074 = vpack.c.b16 %v1049, %v1044
        %v1075 = vpack.c.b16 %v1050, %v1045
        %v1076 = vpack.c.b16 %v1051, %v1046
        %v1077 = vpack.c.b16 %v1057, %v1052
        %v1078 = vpack.c.b16 %v1058, %v1053
        %v1079 = vpack.c.b16 %v1059, %v1054
        %v1080 = vpack.c.b16 %v1060, %v1055
        %v1081 = vpack.c.b16 %v1061, %v1056
        %vm1098 = vcmask 523264
        %v1100 = vsel %vm1098, %v1066, 0
        %v1103 = vsel %vm1098, %v1071, 0
        %v1106 = vsel %vm1098, %v1076, 0
        %v1109 = vsel %vm1098, %v1081, 0
        %1111 = vmatprep.subr.bf16.mxu0 %v879
        %1112 = vmatpush1.bf16.msra.mxu0 %v878
        %1113 = vmatprep.subr.bf16.mxu0 %v881
        %1114 = vmatpush1.bf16.msra.mxu0 %v880
        %1115 = vmatprep.subr.bf16.mxu0 %v883
        %1116 = vmatpush1.bf16.msra.mxu0 %v882
        %1117 = vmatprep.subr.bf16.mxu0 %v885
        %1118 = vmatpush1.bf16.msra.mxu0 %v884
        %1119 = vmatprep.subr.bf16.mxu0 %v887
        %1120 = vmatpush1.bf16.msra.mxu0 %v886
        %1121 = vmatprep.subr.bf16.mxu0 %v889
        %1122 = vmatpush1.bf16.msra.mxu0 %v888
        %1123 = vmatprep.subr.bf16.mxu0 %v891
        %1124 = vmatpush1.bf16.msra.mxu0 %v890
        %1125 = vmatprep.subr.bf16.mxu0 %v893
        %1126 = vmatpush1.bf16.msra.mxu0 %v892
        %1127 = vmatprep.subr.bf16.mxu0 %v895
        %1128 = vmatpush1.bf16.msra.mxu0 %v894
        %1129 = vmatprep.subr.bf16.mxu0 %v897
        %1130 = vmatpush1.bf16.msra.mxu0 %v896
        %1131 = vmatprep.subr.bf16.mxu0 %v899
        %1132 = vmatpush1.bf16.msra.mxu0 %v898
        %1133 = vmatprep.subr.bf16.mxu0 %v901
        %1134 = vmatpush1.bf16.msra.mxu0 %v900
        %1135 = vmatprep.subr.bf16.mxu0 %v903
        %1136 = vmatpush1.bf16.msra.mxu0 %v902
        %1137 = vmatprep.subr.bf16.mxu0 %v905
        %1138 = vmatpush1.bf16.msra.mxu0 %v904
        %1139 = vmatprep.subr.bf16.mxu0 %v907
        %1140 = vmatpush1.bf16.msra.mxu0 %v906
        %1141 = vmatprep.subr.bf16.mxu0 %v909
        %1142 = vmatpush1.bf16.msra.mxu0 %v908
        %1143 = vmatprep.mubr.bf16.mxu0 %v1063
        %1144 = vmatmul.mubr.bf16.gmra.mrb[0].mxu0 %v1062
        %v1145 = vpop.f32.mrb[0].mxu0
        %v1146 = vadd.f32 %v961, %v1145
        %v1147 = vpop.f32.mrb[0].mxu0
        %v1148 = vadd.f32 %v961, %v1147
        %v1149 = vpop.f32.mrb[0].mxu0
        %v1150 = vadd.f32 %v966, %v1149
        %v1151 = vpop.f32.mrb[0].mxu0
        %v1152 = vadd.f32 %v966, %v1151
        %1153 = vmatprep.mubr.bf16.mxu0 %v1068
        %1154 = vmatmul.mubr.bf16.gmra.mrb[0].mxu0 %v1067
        %v1155 = vpop.f32.mrb[0].mxu0
        %v1156 = vadd.f32 %v971, %v1155
        %v1157 = vpop.f32.mrb[0].mxu0
        %v1158 = vadd.f32 %v971, %v1157
        %v1159 = vpop.f32.mrb[0].mxu0
        %v1160 = vadd.f32 %v976, %v1159
        %v1161 = vpop.f32.mrb[0].mxu0
        %v1162 = vadd.f32 %v976, %v1161
        %1163 = vmatprep.mubr.bf16.mxu0 %v1073
        %1164 = vmatmul.mubr.bf16.gmra.mrb[0].mxu0 %v1072
        %v1165 = vpop.f32.mrb[0].mxu0
        %v1166 = vadd.f32 %v981, %v1165
        %v1167 = vpop.f32.mrb[0].mxu0
        %v1168 = vadd.f32 %v981, %v1167
        %v1169 = vpop.f32.mrb[0].mxu0
        %v1170 = vadd.f32 %v986, %v1169
        %v1171 = vpop.f32.mrb[0].mxu0
        %v1172 = vadd.f32 %v986, %v1171
        %1173 = vmatprep.mubr.bf16.mxu0 %v1078
        %1174 = vmatmul.mubr.bf16.gmra.mrb[0].mxu0 %v1077
        %v1175 = vpop.f32.mrb[0].mxu0
        %v1176 = vadd.f32 %v991, %v1175
        %v1177 = vpop.f32.mrb[0].mxu0
        %v1178 = vadd.f32 %v991, %v1177
        %v1179 = vpop.f32.mrb[0].mxu0
        %v1180 = vadd.f32 %v996, %v1179
        %v1181 = vpop.f32.mrb[0].mxu0
        %v1182 = vadd.f32 %v996, %v1181
        %1183 = vdwg.mxu0
        %1184 = vmatprep.subr.bf16.mxu0 %v911
        %1185 = vmatpush1.bf16.msra.mxu0 %v910
        %1186 = vmatprep.subr.bf16.mxu0 %v913
        %1187 = vmatpush1.bf16.msra.mxu0 %v912
        %1188 = vmatprep.subr.bf16.mxu0 %v915
        %1189 = vmatpush1.bf16.msra.mxu0 %v914
        %1190 = vmatprep.subr.bf16.mxu0 %v917
        %1191 = vmatpush1.bf16.msra.mxu0 %v916
        %1192 = vmatprep.subr.bf16.mxu0 %v919
        %1193 = vmatpush1.bf16.msra.mxu0 %v918
        %1194 = vmatprep.subr.bf16.mxu0 %v921
        %1195 = vmatpush1.bf16.msra.mxu0 %v920
        %1196 = vmatprep.subr.bf16.mxu0 %v923
        %1197 = vmatpush1.bf16.msra.mxu0 %v922
        %1198 = vmatprep.subr.bf16.mxu0 %v925
        %1199 = vmatpush1.bf16.msra.mxu0 %v924
        %1200 = vmatprep.subr.bf16.mxu0 %v927
        %1201 = vmatpush1.bf16.msra.mxu0 %v926
        %1202 = vmatprep.subr.bf16.mxu0 %v929
        %1203 = vmatpush1.bf16.msra.mxu0 %v928
        %1204 = vmatprep.subr.bf16.mxu0 %v931
        %1205 = vmatpush1.bf16.msra.mxu0 %v930
        %1206 = vmatprep.subr.bf16.mxu0 %v933
        %1207 = vmatpush1.bf16.msra.mxu0 %v932
        %1208 = vmatprep.subr.bf16.mxu0 %v935
        %1209 = vmatpush1.bf16.msra.mxu0 %v934
        %1210 = vmatprep.subr.bf16.mxu0 %v937
        %1211 = vmatpush1.bf16.msra.mxu0 %v936
        %1212 = vmatprep.subr.bf16.mxu0 %v939
        %1213 = vmatpush1.bf16.msra.mxu0 %v938
        %1214 = vmatprep.subr.bf16.mxu0 %v941
        %1215 = vmatpush1.bf16.msra.mxu0 %v940
        %1216 = vmatprep.mubr.bf16.mxu0 %v1065
        %1217 = vmatmul.mubr.bf16.gmra.mrb[0].mxu0 %v1064
        %v1218 = vpop.f32.mrb[0].mxu0
        %v1219 = vadd.f32 %v1146, %v1218
        %v1220 = vpop.f32.mrb[0].mxu0
        %v1221 = vadd.f32 %v1148, %v1220
        %v1222 = vpop.f32.mrb[0].mxu0
        %v1223 = vadd.f32 %v1150, %v1222
        %v1224 = vpop.f32.mrb[0].mxu0
        %v1225 = vadd.f32 %v1152, %v1224
        %1226 = vmatprep.mubr.bf16.mxu0 %v1070
        %1227 = vmatmul.mubr.bf16.gmra.mrb[0].mxu0 %v1069
        %v1228 = vpop.f32.mrb[0].mxu0
        %v1229 = vadd.f32 %v1156, %v1228
        %v1230 = vpop.f32.mrb[0].mxu0
        %v1231 = vadd.f32 %v1158, %v1230
        %v1232 = vpop.f32.mrb[0].mxu0
        %v1233 = vadd.f32 %v1160, %v1232
        %v1234 = vpop.f32.mrb[0].mxu0
        %v1235 = vadd.f32 %v1162, %v1234
        %1236 = vmatprep.mubr.bf16.mxu0 %v1075
        %1237 = vmatmul.mubr.bf16.gmra.mrb[0].mxu0 %v1074
        %v1238 = vpop.f32.mrb[0].mxu0
        %v1239 = vadd.f32 %v1166, %v1238
        %v1240 = vpop.f32.mrb[0].mxu0
        %v1241 = vadd.f32 %v1168, %v1240
        %v1242 = vpop.f32.mrb[0].mxu0
        %v1243 = vadd.f32 %v1170, %v1242
        %v1244 = vpop.f32.mrb[0].mxu0
        %v1245 = vadd.f32 %v1172, %v1244
        %1246 = vmatprep.mubr.bf16.mxu0 %v1080
        %1247 = vmatmul.mubr.bf16.gmra.mrb[0].mxu0 %v1079
        %v1248 = vpop.f32.mrb[0].mxu0
        %v1249 = vadd.f32 %v1176, %v1248
        %v1250 = vpop.f32.mrb[0].mxu0
        %v1251 = vadd.f32 %v1178, %v1250
        %v1252 = vpop.f32.mrb[0].mxu0
        %v1253 = vadd.f32 %v1180, %v1252
        %v1254 = vpop.f32.mrb[0].mxu0
        %v1255 = vadd.f32 %v1182, %v1254
        %1256 = vdwg.mxu0
        %1257 = vmatprep.subr.bf16.mxu0 %v943
        %1258 = vmatpush1.bf16.msra.mxu0 %v942
        %1259 = vmatprep.subr.bf16.mxu0 %v945
        %1260 = vmatpush1.bf16.msra.mxu0 %v944
        %1261 = vmatprep.subr.bf16.mxu0 %v947
        %1262 = vmatpush1.bf16.msra.mxu0 %v946
        %1263 = vmatprep.subr.bf16.mxu0 %v949
        %1264 = vmatpush1.bf16.msra.mxu0 %v948
        %1265 = vmatprep.subr.bf16.mxu0 0
        %1266 = vmatpush1.bf16.msra.mxu0 0
        %1267 = vmatprep.subr.bf16.mxu0 0
        %1268 = vmatpush1.bf16.msra.mxu0 0
        %1269 = vmatprep.subr.bf16.mxu0 0
        %1270 = vmatpush1.bf16.msra.mxu0 0
        %1271 = vmatprep.subr.bf16.mxu0 0
        %1272 = vmatpush1.bf16.msra.mxu0 0
        %1273 = vmatprep.subr.bf16.mxu0 0
        %1274 = vmatpush1.bf16.msra.mxu0 0
        %1275 = vmatprep.subr.bf16.mxu0 0
        %1276 = vmatpush1.bf16.msra.mxu0 0
        %1277 = vmatprep.subr.bf16.mxu0 0
        %1278 = vmatpush1.bf16.msra.mxu0 0
        %1279 = vmatprep.subr.bf16.mxu0 0
        %1280 = vmatpush1.bf16.msra.mxu0 0
        %1281 = vmatprep.subr.bf16.mxu0 0
        %1282 = vmatpush1.bf16.msra.mxu0 0
        %1283 = vmatprep.subr.bf16.mxu0 0
        %1284 = vmatpush1.bf16.msra.mxu0 0
        %1285 = vmatprep.subr.bf16.mxu0 0
        %1286 = vmatpush1.bf16.msra.mxu0 0
        %1287 = vmatprep.subr.bf16.mxu0 0
        %1288 = vmatpush1.bf16.msra.mxu0 0
        %1289 = vmatprep.mubr.bf16.mxu0 0
        %1290 = vmatmul.mubr.bf16.gmra.mrb[0].mxu0 %v1100
        %v1291 = vpop.f32.mrb[0].mxu0
        %v1292 = vadd.f32 %v1219, %v1291
        %v1293 = vpop.f32.mrb[0].mxu0
        %v1294 = vadd.f32 %v1221, %v1293
        %v1295 = vpop.f32.mrb[0].mxu0
        %v1296 = vadd.f32 %v1223, %v1295
        %v1297 = vpop.f32.mrb[0].mxu0
        %v1298 = vadd.f32 %v1225, %v1297
        %1299 = vmatprep.mubr.bf16.mxu0 0
        %1300 = vmatmul.mubr.bf16.gmra.mrb[0].mxu0 %v1103
        %v1301 = vpop.f32.mrb[0].mxu0
        %v1302 = vadd.f32 %v1229, %v1301
        %v1303 = vpop.f32.mrb[0].mxu0
        %v1304 = vadd.f32 %v1231, %v1303
        %v1305 = vpop.f32.mrb[0].mxu0
        %v1306 = vadd.f32 %v1233, %v1305
        %v1307 = vpop.f32.mrb[0].mxu0
        %v1308 = vadd.f32 %v1235, %v1307
        %1309 = vmatprep.mubr.bf16.mxu0 0
        %1310 = vmatmul.mubr.bf16.gmra.mrb[0].mxu0 %v1106
        %v1311 = vpop.f32.mrb[0].mxu0
        %v1312 = vadd.f32 %v1239, %v1311
        %v1313 = vpop.f32.mrb[0].mxu0
        %v1314 = vadd.f32 %v1241, %v1313
        %v1315 = vpop.f32.mrb[0].mxu0
        %v1316 = vadd.f32 %v1243, %v1315
        %v1317 = vpop.f32.mrb[0].mxu0
        %v1318 = vadd.f32 %v1245, %v1317
        %1319 = vmatprep.mubr.bf16.mxu0 0
        %1320 = vmatmul.mubr.bf16.gmra.mrb[0].mxu0 %v1109
        %v1321 = vpop.f32.mrb[0].mxu0
        %v1322 = vadd.f32 %v1249, %v1321
        %v1323 = vpop.f32.mrb[0].mxu0
        %v1324 = vadd.f32 %v1251, %v1323
        %v1325 = vpop.f32.mrb[0].mxu0
        %v1326 = vadd.f32 %v1253, %v1325
        %v1327 = vpop.f32.mrb[0].mxu0
        %v1328 = vadd.f32 %v1255, %v1327
        %1329 = vdwg.mxu0
        %v1330 = vadd.f32 %v1292, %v236
        %v1331 = vadd.f32 %v1294, %v237
        %v1332 = vadd.f32 %v1296, %v238
        %v1333 = vadd.f32 %v1298, %v239
        %v1334 = vadd.f32 %v1302, %v240
        %v1335 = vadd.f32 %v1304, %v241
        %v1336 = vadd.f32 %v1306, %v242
        %v1337 = vadd.f32 %v1308, %v243
        %v1338 = vadd.f32 %v1312, %v244
        %v1339 = vadd.f32 %v1314, %v245
        %v1340 = vadd.f32 %v1316, %v246
        %v1341 = vadd.f32 %v1318, %v247
        %v1342 = vadd.f32 %v1322, %v248
        %v1343 = vadd.f32 %v1324, %v249
        %v1344 = vadd.f32 %v1326, %v250
        %v1345 = vadd.f32 %v1328, %v251
        %1346 = vst [vmem:[%s203] sm:$0xff] %v1330
        %1347 = vst [vmem:[%s203 + $0x8] sm:$0xff] %v1331
        %1348 = vst [vmem:[%s203 + $0x10] sm:$0xff] %v1332
        %1349 = vst [vmem:[%s203 + $0x18] sm:$0xff] %v1333
        %1350 = vst [vmem:[%s203 + $0x20] sm:$0xff] %v1334
        %1351 = vst [vmem:[%s203 + $0x28] sm:$0xff] %v1335
        %1352 = vst [vmem:[%s203 + $0x30] sm:$0xff] %v1336
        %1353 = vst [vmem:[%s203 + $0x38] sm:$0xff] %v1337
        %1354 = vst [vmem:[%s203 + $0x40] sm:$0xff] %v1338
        %1355 = vst [vmem:[%s203 + $0x48] sm:$0xff] %v1339
        %1356 = vst [vmem:[%s203 + $0x50] sm:$0xff] %v1340
        %1357 = vst [vmem:[%s203 + $0x58] sm:$0xff] %v1341
        %1358 = vst [vmem:[%s203 + $0x60] sm:$0xff] %v1342
        %1359 = vst [vmem:[%s203 + $0x68] sm:$0xff] %v1343
        %1360 = vst [vmem:[%s203 + $0x70] sm:$0xff] %v1344
        %1361 = vst [vmem:[%s203 + $0x78] sm:$0xff] %v1345
        %s1362 = sand.u32 %s97, 1
        %s1363 = scalar_lea.sflag [#allocation5], %s1362
        %s1364 = sand.u32 %s97, 1
        %s1365 = smul.addr %s1364, 128
        %s1366 = scalar_lea.vmem [#allocation8], %s1365
        // Predicated region
        $region41: #{tpu_custom_call.1} parent=31 // pred_check
          %p1367 = pneg %p107
        $region42: #{tpu_custom_call.1} parent=31 // pred_check_branch
          %1369 = sbr.rel (%p1367) target = $region44
        $region43: #{tpu_custom_call.1} parent=31 // pred_region
          %s1371 = ssub.s32 2048, 2048
          %1372 = vsyncadd %s1363, %s1371
          %s1373 = smul.addr %s21, 16
          %s1374 = smul.addr %s1373, 128
          %s1375 = scalar_lea.hbm %s3, %s1374
          %s1376 = sshll.u32 %s1366, 4
          %s1377 = int_to_ptr.vmem [resolvable:$true] %s1376
          %1382 = dma.vmem_to_hbm [thread:$0]  %s1377, 2048, %s1375, %s1363, 256, 256, 16
        $region44: #{tpu_custom_call.1} parent=31 // pred_fallthru
          _
      $region32: #{tpu_custom_call.1} parent=5 // pred_fallthru
        _
      %p1383 = scmp.le.s32.totalorder 2, %s16
      // Predicated region
      $region45: #{tpu_custom_call.1} parent=5 // pred_check
        %p1384 = pneg %p1383
      $region46: #{tpu_custom_call.1} parent=5 // pred_check_branch
        %1386 = sbr.rel (%p1384) target = $region48
      $region47: #{tpu_custom_call.1} parent=5 // pred_region
        %s1387 = ssub.s32 %s16, 2
        // Predicated region
        $region49: #{tpu_custom_call.1} parent=47 // pred_check
          %p1388 = pneg %p113
        $region50: #{tpu_custom_call.1} parent=47 // pred_check_branch
          %1390 = sbr.rel (%p1388) target = $region52
        $region51: #{tpu_custom_call.1} parent=47 // pred_region
          %s1391 = sand.u32 %s98, 1
          %s1392 = scalar_lea.sflag [#allocation5], %s1391
          %s1393 = sand.u32 %s98, 1
          %s1394 = smul.addr %s1393, 128
          %s1395 = scalar_lea.vmem [#allocation8], %s1394
          %1396 = dma.done %s1392, 2048
        $region52: #{tpu_custom_call.1} parent=47 // pred_fallthru
          _
      $region48: #{tpu_custom_call.1} parent=5 // pred_fallthru
        _
    $region6: #{tpu_custom_call.1} parent=1 // loop_footer
      %s20 = sadd.s32 1, %s16
    $region7: #{tpu_custom_call.1} parent=1 // loop_footer_branch
      %15 = sbr.rel target = $region3
    $region8: #{tpu_custom_call.1} parent=1 // loop_exit
      _
    %1397 = vsyncpa [#allocation4], 1
    %s1398 = scalar_lea.sflag [#allocation4], 1
    %1399 = vsyncpa %s1398, 1
    %1400 = vsyncpa [#allocation7], 1
    %1401 = vsyncpa [#allocation5], 1
    %s1402 = scalar_lea.sflag [#allocation5], 1
    %1403 = vsyncpa %s1402, 1

</llo_original>
